<compile_context>
chip_gen: v6e
topology: v6e:2x2x1
jax: 0.10.0
libtpu: 0.0.40
codegen_flags: <defaults>
</compile_context>

<pallas_src>
import functools

import jax
import jax.numpy as jnp
from jax.experimental import pallas as pl
from jax.experimental.pallas import tpu as pltpu

LANE = 128      # channel dims padded to a multiple of this (lane-dense stores)
SUBLANE = 8     # time axis padded to a multiple of this


def _round_up(x, m):
    return (x + m - 1) // m * m


# ---------------------------------------------------------------------------
# Fused whole-network kernel: one grid step == one tile of B_TILE samples,
# every TemporalBlock statically unrolled inside.
# ---------------------------------------------------------------------------

def _tcn_kernel(*refs, layer_meta, K, Lp):
    """refs = (x_ref, *weight_refs, o_ref, xcol_ref).

    layer_meta: tuple of (cin_pad, cout_pad, dilation, has_downsample).
    """
    n_w = sum(6 if has_ds else 4 for (_, _, _, has_ds) in layer_meta)
    x_ref = refs[0]
    w_refs = refs[1:1 + n_w]
    o_ref = refs[1 + n_w]
    xcol_ref = refs[2 + n_w]

    M = x_ref.shape[0]                                   # B_TILE * Lp rows
    # Intra-sample time index of each row of the flattened (B_TILE*Lp, C)
    # activation -- zeroes the causal-pad region of shifted taps.
    tmod = jax.lax.broadcasted_iota(jnp.int32, (M, 1), 0) % Lp

    def causal_conv_relu(x_f32, x_bf16, w_ref, b_ref, dilation, cin):
        """relu(chomp(conv1d(x))): K rolled taps -> bf16 scratch -> 1 matmul."""
        for j in range(K):
            shift = (K - 1 - j) * dilation
            col = slice(j * cin, (j + 1) * cin)          # lane-aligned block
            if shift == 0:
                xcol_ref[:, col] = x_bf16                # reuse the single cast
            elif shift >= Lp:
                # Tap reaches past the causal pad for every valid t: all zero.
                xcol_ref[:, col] = jnp.zeros((M, cin), jnp.bfloat16)
            else:
                # roll = XLU sublane rotate (32-bit); rows with t%Lp < shift
                # would pick up the previous sample's tail -> mask to zero.
                rolled = pltpu.roll(x_f32, shift=shift, axis=0)
                tap = jnp.where(tmod >= shift, rolled, 0.0)
                xcol_ref[:, col] = tap.astype(jnp.bfloat16)
        xcol = xcol_ref[:, :K * cin]
        acc = jnp.dot(xcol, w_ref[...], preferred_element_type=jnp.float32)
        return jnp.maximum(acc + b_ref[...], 0.0)

    x = x_ref[...]                                       # (M, C0p) fp32
    idx = 0
    for (cin, cout, dilation, has_ds) in layer_meta:
        w1, b1, w2, b2 = w_refs[idx:idx + 4]
        idx += 4
        x_bf = x.astype(jnp.bfloat16)                    # cast once per block
        h = causal_conv_relu(x, x_bf, w1, b1, dilation, cin)
        h2 = causal_conv_relu(h, h.astype(jnp.bfloat16), w2, b2, dilation, cout)
        # TODO(synk): nn.Dropout is identity at inference and is not modeled.
        if has_ds:
            wd, bd = w_refs[idx:idx + 2]
            idx += 2
            res = jnp.dot(x_bf, wd[...],
                          preferred_element_type=jnp.float32) + bd[...]
        else:
            res = x                                      # identity skip, fp32
        x = jnp.maximum(h2 + res, 0.0)
    o_ref[...] = x


def _vmem_limit_bytes(m_rows, c0_p, c_last_p, cmax, K, weight_bytes):
    est = (2 * m_rows * c0_p * 4        # double-buffered input block
           + 2 * m_rows * c_last_p * 4  # double-buffered output block
           + m_rows * K * cmax * 2      # bf16 xcol scratch
           + 2 * weight_bytes           # resident packed weights
           + 8 * m_rows * cmax * 4)     # live activation temporaries
    # >= 32 MiB (scoped default), capped at 48 MiB so the same kernel stays
    # inside v7x's 64 MiB/TC VMEM; v5e/v6e have 128 MiB of physical headroom.
    return int(min(max(est, 32 * 1024 * 1024), 48 * 1024 * 1024))


def tcn_forward(x_ncl, packed_params, kernel_size, c_last, *, b_tile=32):
    """x_ncl: (N, C_in, L) as in PyTorch; returns (N, c_last, L)."""
    N, c_in, L = x_ncl.shape

    # Layer metadata + flat weight argument list (one pallas_call for all).
    weight_args, layer_meta = [], []
    for i, ((w1, b1), (w2, b2), (wd, bd)) in enumerate(packed_params):
        cin_p = w1.shape[0] // kernel_size
        cout_p = w1.shape[1]
        has_ds = wd is not None
        layer_meta.append((cin_p, cout_p, 2 ** i, has_ds))
        weight_args += [w1, b1, w2, b2]
        if has_ds:
            weight_args += [wd, bd]
    layer_meta = tuple(layer_meta)
    c0_p = layer_meta[0][0]
    c_last_p = layer_meta[-1][1]
    cmax = max(max(ci, co) for ci, co, _, _ in layer_meta)

    # Layout: (N, L, C) -> pad time to a sublane multiple (causal => the right
    # pad is inert), channels to a lane multiple, batch to the batch tile.
    Lp = _round_up(L, SUBLANE)
    rows_cap = max(1, (4 * 1024 * 1024) // max(1, cmax * 4 * Lp))  # samples/tile
    b_tile = max(1, min(b_tile, N, rows_cap))
    Np = _round_up(N, b_tile)
    M = b_tile * Lp

    x = jnp.transpose(x_ncl, (0, 2, 1))
    x = jnp.pad(x, ((0, Np - N), (0, Lp - L), (0, c0_p - c_in)))
    x2d = x.reshape(Np * Lp, c0_p)                       # layout-free reshape

    # TODO(synk): for very long L add a time-tile grid axis with a
    # (kernel_size-1)*dilation halo; full-L tiles are fine at these sizes.
    in_specs = [pl.BlockSpec((M, c0_p), lambda n: (n, 0))]
    in_specs += [pl.BlockSpec(w.shape, lambda n: (0, 0)) for w in weight_args]
    out_specs = pl.BlockSpec((M, c_last_p), lambda n: (n, 0))

    weight_bytes = sum(int(w.size) * w.dtype.itemsize for w in weight_args)
    vmem_limit = _vmem_limit_bytes(M, c0_p, c_last_p, cmax, kernel_size,
                                   weight_bytes)

    kern = functools.partial(_tcn_kernel, layer_meta=layer_meta,
                             K=kernel_size, Lp=Lp)

    out2d = pl.pallas_call(
        kern,
        out_shape=jax.ShapeDtypeStruct((Np * Lp, c_last_p), jnp.float32),
        grid=(Np // b_tile,),
        in_specs=in_specs,
        out_specs=out_specs,
        scratch_shapes=[pltpu.VMEM((M, kernel_size * cmax), jnp.bfloat16)],
        compiler_params=pltpu.CompilerParams(
            dimension_semantics=("parallel",),           # megacore over batch
            vmem_limit_bytes=vmem_limit,
        ),
    )(x2d, *weight_args)

    out = out2d.reshape(Np, Lp, c_last_p)[:N, :L, :c_last]
    return jnp.transpose(out, (0, 2, 1))                 # back to (N, C, L)


# ---------------------------------------------------------------------------
# Parameters (mirror PyTorch init) + packing into the Pallas layouts.
# ---------------------------------------------------------------------------

def weight_norm_conv_init(key, c_in, c_out, k):
    """weight_norm(Conv1d) at init: g = ||v||, so the effective weight is v."""
    kv, kb = jax.random.split(key)
    w = 0.01 * jax.random.normal(kv, (c_out, c_in, k), jnp.float32)  # (O, C, K)
    bound = 1.0 / jnp.sqrt(jnp.float32(c_in * k))
    b = jax.random.uniform(kb, (c_out,), jnp.float32, -bound, bound)
    return w, b


def downsample_init(key, c_in, c_out):
    if c_in == c_out:
        return None, None              # PyTorch: downsample=None -> identity
    kw, kb = jax.random.split(key)
    w = 0.01 * jax.random.normal(kw, (c_out, c_in, 1), jnp.float32)
    bound = 1.0 / jnp.sqrt(jnp.float32(c_in))
    b = jax.random.uniform(kb, (c_out,), jnp.float32, -bound, bound)
    return w, b


def pack_conv(w_ock, b, c_in_pad, c_out_pad):
    """(O,C,K) -> bf16 (K*c_in_pad, c_out_pad) im2col weight, fp32 (1,c_out_pad) bias."""
    O, C, K = w_ock.shape
    w_kco = jnp.transpose(w_ock, (2, 1, 0))                   # (K, C, O)
    w_full = jnp.zeros((K, c_in_pad, c_out_pad), jnp.float32)
    w_full = w_full.at[:, :C, :O].set(w_kco)
    wcol = w_full.reshape(K * c_in_pad, c_out_pad).astype(jnp.bfloat16)
    b_full = jnp.zeros((1, c_out_pad), jnp.float32).at[0, :O].set(b)
    return wcol, b_full


def pack_downsample(w_oc1, b, c_in_pad, c_out_pad):
    if w_oc1 is None:
        return None, None
    O, C, _ = w_oc1.shape
    w_full = jnp.zeros((c_in_pad, c_out_pad), jnp.float32)
    w_full = w_full.at[:C, :O].set(jnp.transpose(w_oc1[:, :, 0], (1, 0)))
    b_full = jnp.zeros((1, c_out_pad), jnp.float32).at[0, :O].set(b)
    return w_full.astype(jnp.bfloat16), b_full


def init_tcn_params(key, num_inputs, num_channels, kernel_size):
    # TODO(synk): padding tiny channel counts (8 -> 128) wastes lanes; for
    # production channel counts near/above 128 this padding is near-free.
    raw, packed = [], []
    c_in = num_inputs
    keys = jax.random.split(key, 3 * len(num_channels))
    for i, c_out in enumerate(num_channels):
        k1, k2, kd = keys[3 * i:3 * i + 3]
        w1, b1 = weight_norm_conv_init(k1, c_in, c_out, kernel_size)
        w2, b2 = weight_norm_conv_init(k2, c_out, c_out, kernel_size)
        wd, bd = downsample_init(kd, c_in, c_out)
        raw.append((w1, b1, w2, b2, wd, bd))
        ci_p, co_p = _round_up(c_in, LANE), _round_up(c_out, LANE)
        packed.append((pack_conv(w1, b1, ci_p, co_p),
                       pack_conv(w2, b2, co_p, co_p),
                       pack_downsample(wd, bd, ci_p, co_p)))
        c_in = c_out
    return raw, packed


# ---------------------------------------------------------------------------
# Pure-JAX fp32 reference for validation.
# ---------------------------------------------------------------------------

def _ref_causal_conv(x_nlc, w_ock, b, d):
    N, L, C = x_nlc.shape
    O, _, K = w_ock.shape
    p = (K - 1) * d
    xp = jnp.pad(x_nlc, ((0, 0), (p, 0), (0, 0)))
    out = jnp.zeros((N, L, O), jnp.float32) + b
    for j in range(K):
        out = out + jnp.einsum("nlc,oc->nlo",
                               xp[:, j * d:j * d + L, :], w_ock[:, :, j])
    return out


def tcn_reference(x_ncl, raw_params, kernel_size):
    x = jnp.transpose(x_ncl, (0, 2, 1))
    for i, (w1, b1, w2, b2, wd, bd) in enumerate(raw_params):
        d = 2 ** i
        h = jax.nn.relu(_ref_causal_conv(x, w1, b1, d))
        h = jax.nn.relu(_ref_causal_conv(h, w2, b2, d))
        res = x if wd is None else jnp.einsum("nlc,oc->nlo", x, wd[:, :, 0]) + bd
        x = jax.nn.relu(h + res)
    return jnp.transpose(x, (0, 2, 1))


if __name__ == "__main__":
    key = jax.random.PRNGKey(0)
    num_inputs, num_channels, kernel_size = 4, [8, 8, 8], 2
    N, L = 4, 16

    kx, kp = jax.random.split(key)
    x = jax.random.normal(kx, (N, num_inputs, L), jnp.float32)
    raw_params, packed_params = init_tcn_params(kp, num_inputs, num_channels,
                                                kernel_size)

    out = tcn_forward(x, packed_params, kernel_size, num_channels[-1])
    jax.block_until_ready(out)
    assert out.shape == (N, num_channels[-1], L)
    assert bool(jnp.all(jnp.isfinite(out)))

    ref = tcn_reference(x, raw_params, kernel_size)
    assert bool(jnp.allclose(out, ref, atol=2e-2, rtol=2e-2)), \
        float(jnp.max(jnp.abs(out - ref)))

    print("KERNEL_OK")
</pallas_src>

<mosaic_0001>
module attributes {stable_mosaic.version = 11 : i64} {
  func.func @_tcn_kernel(%arg0: i32, %arg1: memref<64x128xf32, #tpu.memory_space<vmem>>, %arg2: memref<256x128xbf16, #tpu.memory_space<vmem>>, %arg3: memref<1x128xf32, #tpu.memory_space<vmem>>, %arg4: memref<256x128xbf16, #tpu.memory_space<vmem>>, %arg5: memref<1x128xf32, #tpu.memory_space<vmem>>, %arg6: memref<128x128xbf16, #tpu.memory_space<vmem>>, %arg7: memref<1x128xf32, #tpu.memory_space<vmem>>, %arg8: memref<256x128xbf16, #tpu.memory_space<vmem>>, %arg9: memref<1x128xf32, #tpu.memory_space<vmem>>, %arg10: memref<256x128xbf16, #tpu.memory_space<vmem>>, %arg11: memref<1x128xf32, #tpu.memory_space<vmem>>, %arg12: memref<256x128xbf16, #tpu.memory_space<vmem>>, %arg13: memref<1x128xf32, #tpu.memory_space<vmem>>, %arg14: memref<256x128xbf16, #tpu.memory_space<vmem>>, %arg15: memref<1x128xf32, #tpu.memory_space<vmem>>, %arg16: memref<64x128xf32, #tpu.memory_space<vmem>>, %arg17: memref<64x256xbf16, #tpu.memory_space<vmem>>) attributes {dimension_semantics = [#tpu.dimension_semantics<parallel>], iteration_bounds = array<i64: 1>, scalar_prefetch = 0 : i64, scratch_operands = 1 : i64, tpu.core_type = #tpu.core_type<tc>, window_params = [{transform_indices = @transform_0, window_bounds = array<i64: 64, 128>}, {pipeline_mode = #tpu.pipeline_mode<synchronous>, transform_indices = @transform_1, window_bounds = array<i64: 256, 128>}, {pipeline_mode = #tpu.pipeline_mode<synchronous>, transform_indices = @transform_2, window_bounds = array<i64: 1, 128>}, {pipeline_mode = #tpu.pipeline_mode<synchronous>, transform_indices = @transform_3, window_bounds = array<i64: 256, 128>}, {pipeline_mode = #tpu.pipeline_mode<synchronous>, transform_indices = @transform_4, window_bounds = array<i64: 1, 128>}, {pipeline_mode = #tpu.pipeline_mode<synchronous>, transform_indices = @transform_5, window_bounds = array<i64: 128, 128>}, {pipeline_mode = #tpu.pipeline_mode<synchronous>, transform_indices = @transform_6, window_bounds = array<i64: 1, 128>}, {pipeline_mode = #tpu.pipeline_mode<synchronous>, transform_indices = @transform_7, window_bounds = array<i64: 256, 128>}, {pipeline_mode = #tpu.pipeline_mode<synchronous>, transform_indices = @transform_8, window_bounds = array<i64: 1, 128>}, {pipeline_mode = #tpu.pipeline_mode<synchronous>, transform_indices = @transform_9, window_bounds = array<i64: 256, 128>}, {pipeline_mode = #tpu.pipeline_mode<synchronous>, transform_indices = @transform_10, window_bounds = array<i64: 1, 128>}, {pipeline_mode = #tpu.pipeline_mode<synchronous>, transform_indices = @transform_11, window_bounds = array<i64: 256, 128>}, {pipeline_mode = #tpu.pipeline_mode<synchronous>, transform_indices = @transform_12, window_bounds = array<i64: 1, 128>}, {pipeline_mode = #tpu.pipeline_mode<synchronous>, transform_indices = @transform_13, window_bounds = array<i64: 256, 128>}, {pipeline_mode = #tpu.pipeline_mode<synchronous>, transform_indices = @transform_14, window_bounds = array<i64: 1, 128>}, {transform_indices = @transform_15, window_bounds = array<i64: 64, 128>}]} {
    %0 = tpu.iota {dimensions = array<i32: 0>} : vector<64x1xi32>
    %c16_i32 = arith.constant 16 : i32
    %c0_i32 = arith.constant 0 : i32
    %1 = arith.cmpi eq, %c16_i32, %c0_i32 : i32
    %c1_i32 = arith.constant 1 : i32
    %2 = arith.select %1, %c1_i32, %c16_i32 : i32
    %3 = vector.broadcast %2 : i32 to vector<64x1xi32>
    %4 = arith.remsi %0, %3 : vector<64x1xi32>
    %c0_i32_0 = arith.constant 0 : i32
    %5 = vector.broadcast %c0_i32_0 : i32 to vector<64x1xi32>
    %6 = arith.cmpi ne, %4, %5 : vector<64x1xi32>
    %c0_i32_1 = arith.constant 0 : i32
    %7 = vector.broadcast %c0_i32_1 : i32 to vector<64x1xi32>
    %8 = arith.cmpi slt, %4, %7 : vector<64x1xi32>
    %c0_i32_2 = arith.constant 0 : i32
    %9 = arith.cmpi slt, %2, %c0_i32_2 : i32
    %10 = vector.broadcast %9 : i1 to vector<64x1xi1>
    %11 = vector.broadcast %10 : vector<64x1xi1> to vector<64x1xi1>
    %12 = arith.xori %8, %11 : vector<64x1xi1>
    %13 = arith.andi %12, %6 : vector<64x1xi1>
    %14 = vector.broadcast %2 : i32 to vector<64x1xi32>
    %15 = arith.addi %4, %14 : vector<64x1xi32>
    %16 = arith.select %13, %15, %4 : vector<64x1xi1>, vector<64x1xi32>
    %c0 = arith.constant 0 : index
    %c0_3 = arith.constant 0 : index
    %17 = vector.load %arg1[%c0, %c0_3] : memref<64x128xf32, #tpu.memory_space<vmem>>, vector<64x128xf32>
    %18 = arith.truncf %17 : vector<64x128xf32> to vector<64x128xbf16>
    %c1_i32_4 = arith.constant 1 : i32
    %19 = tpu.dynamic_rotate %17 by %c1_i32_4 dim 0 : vector<64x128xf32>, i32 -> vector<64x128xf32>
    %c1_i32_5 = arith.constant 1 : i32
    %20 = vector.broadcast %c1_i32_5 : i32 to vector<64x1xi32>
    %21 = arith.cmpi sge, %16, %20 : vector<64x1xi32>
    %cst = arith.constant 0.000000e+00 : f32
    %22 = vector.shape_cast %21 : vector<64x1xi1> to vector<64x1xi1>
    %23 = vector.broadcast %22 : vector<64x1xi1> to vector<64x128xi1>
    %24 = vector.broadcast %cst : f32 to vector<64x128xf32>
    %25 = arith.select %23, %19, %24 : vector<64x128xi1>, vector<64x128xf32>
    %26 = arith.truncf %25 : vector<64x128xf32> to vector<64x128xbf16>
    %c0_6 = arith.constant 0 : index
    %c0_7 = arith.constant 0 : index
    %27 = vector.load %arg17[%c0_6, %c0_7] : memref<64x256xbf16, #tpu.memory_space<vmem>>, vector<64x128xbf16>
    tpu.vector_store %arg17[%c0_6, %c0_7], %26 {strides = array<i32>} : memref<64x256xbf16, #tpu.memory_space<vmem>>, vector<64x128xbf16>,
    %c0_8 = arith.constant 0 : index
    %c128 = arith.constant 128 : index
    %28 = vector.load %arg17[%c0_8, %c128] : memref<64x256xbf16, #tpu.memory_space<vmem>>, vector<64x128xbf16>
    tpu.vector_store %arg17[%c0_8, %c128], %18 {strides = array<i32>} : memref<64x256xbf16, #tpu.memory_space<vmem>>, vector<64x128xbf16>,
    %c0_9 = arith.constant 0 : index
    %c0_10 = arith.constant 0 : index
    %29 = vector.load %arg17[%c0_9, %c0_10] : memref<64x256xbf16, #tpu.memory_space<vmem>>, vector<64x256xbf16>
    %c0_11 = arith.constant 0 : index
    %c0_12 = arith.constant 0 : index
    %30 = vector.load %arg2[%c0_11, %c0_12] : memref<256x128xbf16, #tpu.memory_space<vmem>>, vector<256x128xbf16>
    %cst_13 = arith.constant dense<0.000000e+00> : vector<64x128xf32>
    %31 = tpu.matmul %29, %30, %cst_13 {dimension_numbers = #tpu.dot_dimension_numbers<[1], [0], [0], [1], [0, 0, 1, 1], [], []>} : vector<64x256xbf16>, vector<256x128xbf16>, vector<64x128xf32> -> vector<64x128xf32>
    %c0_14 = arith.constant 0 : index
    %c0_15 = arith.constant 0 : index
    %32 = vector.load %arg3[%c0_14, %c0_15] : memref<1x128xf32, #tpu.memory_space<vmem>>, vector<1x128xf32>
    %33 = vector.broadcast %32 : vector<1x128xf32> to vector<64x128xf32>
    %34 = arith.addf %31, %33 : vector<64x128xf32>
    %cst_16 = arith.constant 0.000000e+00 : f32
    %35 = vector.broadcast %cst_16 : f32 to vector<64x128xf32>
    %36 = arith.maximumf %34, %35 : vector<64x128xf32>
    %37 = arith.truncf %36 : vector<64x128xf32> to vector<64x128xbf16>
    %c1_i32_17 = arith.constant 1 : i32
    %38 = tpu.dynamic_rotate %36 by %c1_i32_17 dim 0 : vector<64x128xf32>, i32 -> vector<64x128xf32>
    %c1_i32_18 = arith.constant 1 : i32
    %39 = vector.broadcast %c1_i32_18 : i32 to vector<64x1xi32>
    %40 = arith.cmpi sge, %16, %39 : vector<64x1xi32>
    %cst_19 = arith.constant 0.000000e+00 : f32
    %41 = vector.shape_cast %40 : vector<64x1xi1> to vector<64x1xi1>
    %42 = vector.broadcast %41 : vector<64x1xi1> to vector<64x128xi1>
    %43 = vector.broadcast %cst_19 : f32 to vector<64x128xf32>
    %44 = arith.select %42, %38, %43 : vector<64x128xi1>, vector<64x128xf32>
    %45 = arith.truncf %44 : vector<64x128xf32> to vector<64x128xbf16>
    %c0_20 = arith.constant 0 : index
    %c0_21 = arith.constant 0 : index
    %46 = vector.load %arg17[%c0_20, %c0_21] : memref<64x256xbf16, #tpu.memory_space<vmem>>, vector<64x128xbf16>
    tpu.vector_store %arg17[%c0_20, %c0_21], %45 {strides = array<i32>} : memref<64x256xbf16, #tpu.memory_space<vmem>>, vector<64x128xbf16>,
    %c0_22 = arith.constant 0 : index
    %c128_23 = arith.constant 128 : index
    %47 = vector.load %arg17[%c0_22, %c128_23] : memref<64x256xbf16, #tpu.memory_space<vmem>>, vector<64x128xbf16>
    tpu.vector_store %arg17[%c0_22, %c128_23], %37 {strides = array<i32>} : memref<64x256xbf16, #tpu.memory_space<vmem>>, vector<64x128xbf16>,
    %c0_24 = arith.constant 0 : index
    %c0_25 = arith.constant 0 : index
    %48 = vector.load %arg17[%c0_24, %c0_25] : memref<64x256xbf16, #tpu.memory_space<vmem>>, vector<64x256xbf16>
    %c0_26 = arith.constant 0 : index
    %c0_27 = arith.constant 0 : index
    %49 = vector.load %arg4[%c0_26, %c0_27] : memref<256x128xbf16, #tpu.memory_space<vmem>>, vector<256x128xbf16>
    %cst_28 = arith.constant dense<0.000000e+00> : vector<64x128xf32>
    %50 = tpu.matmul %48, %49, %cst_28 {dimension_numbers = #tpu.dot_dimension_numbers<[1], [0], [0], [1], [0, 0, 1, 1], [], []>} : vector<64x256xbf16>, vector<256x128xbf16>, vector<64x128xf32> -> vector<64x128xf32>
    %c0_29 = arith.constant 0 : index
    %c0_30 = arith.constant 0 : index
    %51 = vector.load %arg5[%c0_29, %c0_30] : memref<1x128xf32, #tpu.memory_space<vmem>>, vector<1x128xf32>
    %52 = vector.broadcast %51 : vector<1x128xf32> to vector<64x128xf32>
    %53 = arith.addf %50, %52 : vector<64x128xf32>
    %cst_31 = arith.constant 0.000000e+00 : f32
    %54 = vector.broadcast %cst_31 : f32 to vector<64x128xf32>
    %55 = arith.maximumf %53, %54 : vector<64x128xf32>
    %c0_32 = arith.constant 0 : index
    %c0_33 = arith.constant 0 : index
    %56 = vector.load %arg6[%c0_32, %c0_33] : memref<128x128xbf16, #tpu.memory_space<vmem>>, vector<128x128xbf16>
    %cst_34 = arith.constant dense<0.000000e+00> : vector<64x128xf32>
    %57 = tpu.matmul %18, %56, %cst_34 {dimension_numbers = #tpu.dot_dimension_numbers<[1], [0], [0], [1], [0, 0, 1, 1], [], []>} : vector<64x128xbf16>, vector<128x128xbf16>, vector<64x128xf32> -> vector<64x128xf32>
    %c0_35 = arith.constant 0 : index
    %c0_36 = arith.constant 0 : index
    %58 = vector.load %arg7[%c0_35, %c0_36] : memref<1x128xf32, #tpu.memory_space<vmem>>, vector<1x128xf32>
    %59 = vector.broadcast %58 : vector<1x128xf32> to vector<64x128xf32>
    %60 = arith.addf %57, %59 : vector<64x128xf32>
    %61 = arith.addf %55, %60 : vector<64x128xf32>
    %cst_37 = arith.constant 0.000000e+00 : f32
    %62 = vector.broadcast %cst_37 : f32 to vector<64x128xf32>
    %63 = arith.maximumf %61, %62 : vector<64x128xf32>
    %64 = arith.truncf %63 : vector<64x128xf32> to vector<64x128xbf16>
    %c2_i32 = arith.constant 2 : i32
    %65 = tpu.dynamic_rotate %63 by %c2_i32 dim 0 : vector<64x128xf32>, i32 -> vector<64x128xf32>
    %c2_i32_38 = arith.constant 2 : i32
    %66 = vector.broadcast %c2_i32_38 : i32 to vector<64x1xi32>
    %67 = arith.cmpi sge, %16, %66 : vector<64x1xi32>
    %cst_39 = arith.constant 0.000000e+00 : f32
    %68 = vector.shape_cast %67 : vector<64x1xi1> to vector<64x1xi1>
    %69 = vector.broadcast %68 : vector<64x1xi1> to vector<64x128xi1>
    %70 = vector.broadcast %cst_39 : f32 to vector<64x128xf32>
    %71 = arith.select %69, %65, %70 : vector<64x128xi1>, vector<64x128xf32>
    %72 = arith.truncf %71 : vector<64x128xf32> to vector<64x128xbf16>
    %c0_40 = arith.constant 0 : index
    %c0_41 = arith.constant 0 : index
    %73 = vector.load %arg17[%c0_40, %c0_41] : memref<64x256xbf16, #tpu.memory_space<vmem>>, vector<64x128xbf16>
    tpu.vector_store %arg17[%c0_40, %c0_41], %72 {strides = array<i32>} : memref<64x256xbf16, #tpu.memory_space<vmem>>, vector<64x128xbf16>,
    %c0_42 = arith.constant 0 : index
    %c128_43 = arith.constant 128 : index
    %74 = vector.load %arg17[%c0_42, %c128_43] : memref<64x256xbf16, #tpu.memory_space<vmem>>, vector<64x128xbf16>
    tpu.vector_store %arg17[%c0_42, %c128_43], %64 {strides = array<i32>} : memref<64x256xbf16, #tpu.memory_space<vmem>>, vector<64x128xbf16>,
    %c0_44 = arith.constant 0 : index
    %c0_45 = arith.constant 0 : index
    %75 = vector.load %arg17[%c0_44, %c0_45] : memref<64x256xbf16, #tpu.memory_space<vmem>>, vector<64x256xbf16>
    %c0_46 = arith.constant 0 : index
    %c0_47 = arith.constant 0 : index
    %76 = vector.load %arg8[%c0_46, %c0_47] : memref<256x128xbf16, #tpu.memory_space<vmem>>, vector<256x128xbf16>
    %cst_48 = arith.constant dense<0.000000e+00> : vector<64x128xf32>
    %77 = tpu.matmul %75, %76, %cst_48 {dimension_numbers = #tpu.dot_dimension_numbers<[1], [0], [0], [1], [0, 0, 1, 1], [], []>} : vector<64x256xbf16>, vector<256x128xbf16>, vector<64x128xf32> -> vector<64x128xf32>
    %c0_49 = arith.constant 0 : index
    %c0_50 = arith.constant 0 : index
    %78 = vector.load %arg9[%c0_49, %c0_50] : memref<1x128xf32, #tpu.memory_space<vmem>>, vector<1x128xf32>
    %79 = vector.broadcast %78 : vector<1x128xf32> to vector<64x128xf32>
    %80 = arith.addf %77, %79 : vector<64x128xf32>
    %cst_51 = arith.constant 0.000000e+00 : f32
    %81 = vector.broadcast %cst_51 : f32 to vector<64x128xf32>
    %82 = arith.maximumf %80, %81 : vector<64x128xf32>
    %83 = arith.truncf %82 : vector<64x128xf32> to vector<64x128xbf16>
    %c2_i32_52 = arith.constant 2 : i32
    %84 = tpu.dynamic_rotate %82 by %c2_i32_52 dim 0 : vector<64x128xf32>, i32 -> vector<64x128xf32>
    %c2_i32_53 = arith.constant 2 : i32
    %85 = vector.broadcast %c2_i32_53 : i32 to vector<64x1xi32>
    %86 = arith.cmpi sge, %16, %85 : vector<64x1xi32>
    %cst_54 = arith.constant 0.000000e+00 : f32
    %87 = vector.shape_cast %86 : vector<64x1xi1> to vector<64x1xi1>
    %88 = vector.broadcast %87 : vector<64x1xi1> to vector<64x128xi1>
    %89 = vector.broadcast %cst_54 : f32 to vector<64x128xf32>
    %90 = arith.select %88, %84, %89 : vector<64x128xi1>, vector<64x128xf32>
    %91 = arith.truncf %90 : vector<64x128xf32> to vector<64x128xbf16>
    %c0_55 = arith.constant 0 : index
    %c0_56 = arith.constant 0 : index
    %92 = vector.load %arg17[%c0_55, %c0_56] : memref<64x256xbf16, #tpu.memory_space<vmem>>, vector<64x128xbf16>
    tpu.vector_store %arg17[%c0_55, %c0_56], %91 {strides = array<i32>} : memref<64x256xbf16, #tpu.memory_space<vmem>>, vector<64x128xbf16>,
    %c0_57 = arith.constant 0 : index
    %c128_58 = arith.constant 128 : index
    %93 = vector.load %arg17[%c0_57, %c128_58] : memref<64x256xbf16, #tpu.memory_space<vmem>>, vector<64x128xbf16>
    tpu.vector_store %arg17[%c0_57, %c128_58], %83 {strides = array<i32>} : memref<64x256xbf16, #tpu.memory_space<vmem>>, vector<64x128xbf16>,
    %c0_59 = arith.constant 0 : index
    %c0_60 = arith.constant 0 : index
    %94 = vector.load %arg17[%c0_59, %c0_60] : memref<64x256xbf16, #tpu.memory_space<vmem>>, vector<64x256xbf16>
    %c0_61 = arith.constant 0 : index
    %c0_62 = arith.constant 0 : index
    %95 = vector.load %arg10[%c0_61, %c0_62] : memref<256x128xbf16, #tpu.memory_space<vmem>>, vector<256x128xbf16>
    %cst_63 = arith.constant dense<0.000000e+00> : vector<64x128xf32>
    %96 = tpu.matmul %94, %95, %cst_63 {dimension_numbers = #tpu.dot_dimension_numbers<[1], [0], [0], [1], [0, 0, 1, 1], [], []>} : vector<64x256xbf16>, vector<256x128xbf16>, vector<64x128xf32> -> vector<64x128xf32>
    %c0_64 = arith.constant 0 : index
    %c0_65 = arith.constant 0 : index
    %97 = vector.load %arg11[%c0_64, %c0_65] : memref<1x128xf32, #tpu.memory_space<vmem>>, vector<1x128xf32>
    %98 = vector.broadcast %97 : vector<1x128xf32> to vector<64x128xf32>
    %99 = arith.addf %96, %98 : vector<64x128xf32>
    %cst_66 = arith.constant 0.000000e+00 : f32
    %100 = vector.broadcast %cst_66 : f32 to vector<64x128xf32>
    %101 = arith.maximumf %99, %100 : vector<64x128xf32>
    %102 = arith.addf %101, %63 : vector<64x128xf32>
    %cst_67 = arith.constant 0.000000e+00 : f32
    %103 = vector.broadcast %cst_67 : f32 to vector<64x128xf32>
    %104 = arith.maximumf %102, %103 : vector<64x128xf32>
    %105 = arith.truncf %104 : vector<64x128xf32> to vector<64x128xbf16>
    %c4_i32 = arith.constant 4 : i32
    %106 = tpu.dynamic_rotate %104 by %c4_i32 dim 0 : vector<64x128xf32>, i32 -> vector<64x128xf32>
    %c4_i32_68 = arith.constant 4 : i32
    %107 = vector.broadcast %c4_i32_68 : i32 to vector<64x1xi32>
    %108 = arith.cmpi sge, %16, %107 : vector<64x1xi32>
    %cst_69 = arith.constant 0.000000e+00 : f32
    %109 = vector.shape_cast %108 : vector<64x1xi1> to vector<64x1xi1>
    %110 = vector.broadcast %109 : vector<64x1xi1> to vector<64x128xi1>
    %111 = vector.broadcast %cst_69 : f32 to vector<64x128xf32>
    %112 = arith.select %110, %106, %111 : vector<64x128xi1>, vector<64x128xf32>
    %113 = arith.truncf %112 : vector<64x128xf32> to vector<64x128xbf16>
    %c0_70 = arith.constant 0 : index
    %c0_71 = arith.constant 0 : index
    %114 = vector.load %arg17[%c0_70, %c0_71] : memref<64x256xbf16, #tpu.memory_space<vmem>>, vector<64x128xbf16>
    tpu.vector_store %arg17[%c0_70, %c0_71], %113 {strides = array<i32>} : memref<64x256xbf16, #tpu.memory_space<vmem>>, vector<64x128xbf16>,
    %c0_72 = arith.constant 0 : index
    %c128_73 = arith.constant 128 : index
    %115 = vector.load %arg17[%c0_72, %c128_73] : memref<64x256xbf16, #tpu.memory_space<vmem>>, vector<64x128xbf16>
    tpu.vector_store %arg17[%c0_72, %c128_73], %105 {strides = array<i32>} : memref<64x256xbf16, #tpu.memory_space<vmem>>, vector<64x128xbf16>,
    %c0_74 = arith.constant 0 : index
    %c0_75 = arith.constant 0 : index
    %116 = vector.load %arg17[%c0_74, %c0_75] : memref<64x256xbf16, #tpu.memory_space<vmem>>, vector<64x256xbf16>
    %c0_76 = arith.constant 0 : index
    %c0_77 = arith.constant 0 : index
    %117 = vector.load %arg12[%c0_76, %c0_77] : memref<256x128xbf16, #tpu.memory_space<vmem>>, vector<256x128xbf16>
    %cst_78 = arith.constant dense<0.000000e+00> : vector<64x128xf32>
    %118 = tpu.matmul %116, %117, %cst_78 {dimension_numbers = #tpu.dot_dimension_numbers<[1], [0], [0], [1], [0, 0, 1, 1], [], []>} : vector<64x256xbf16>, vector<256x128xbf16>, vector<64x128xf32> -> vector<64x128xf32>
    %c0_79 = arith.constant 0 : index
    %c0_80 = arith.constant 0 : index
    %119 = vector.load %arg13[%c0_79, %c0_80] : memref<1x128xf32, #tpu.memory_space<vmem>>, vector<1x128xf32>
    %120 = vector.broadcast %119 : vector<1x128xf32> to vector<64x128xf32>
    %121 = arith.addf %118, %120 : vector<64x128xf32>
    %cst_81 = arith.constant 0.000000e+00 : f32
    %122 = vector.broadcast %cst_81 : f32 to vector<64x128xf32>
    %123 = arith.maximumf %121, %122 : vector<64x128xf32>
    %124 = arith.truncf %123 : vector<64x128xf32> to vector<64x128xbf16>
    %c4_i32_82 = arith.constant 4 : i32
    %125 = tpu.dynamic_rotate %123 by %c4_i32_82 dim 0 : vector<64x128xf32>, i32 -> vector<64x128xf32>
    %c4_i32_83 = arith.constant 4 : i32
    %126 = vector.broadcast %c4_i32_83 : i32 to vector<64x1xi32>
    %127 = arith.cmpi sge, %16, %126 : vector<64x1xi32>
    %cst_84 = arith.constant 0.000000e+00 : f32
    %128 = vector.shape_cast %127 : vector<64x1xi1> to vector<64x1xi1>
    %129 = vector.broadcast %128 : vector<64x1xi1> to vector<64x128xi1>
    %130 = vector.broadcast %cst_84 : f32 to vector<64x128xf32>
    %131 = arith.select %129, %125, %130 : vector<64x128xi1>, vector<64x128xf32>
    %132 = arith.truncf %131 : vector<64x128xf32> to vector<64x128xbf16>
    %c0_85 = arith.constant 0 : index
    %c0_86 = arith.constant 0 : index
    %133 = vector.load %arg17[%c0_85, %c0_86] : memref<64x256xbf16, #tpu.memory_space<vmem>>, vector<64x128xbf16>
    tpu.vector_store %arg17[%c0_85, %c0_86], %132 {strides = array<i32>} : memref<64x256xbf16, #tpu.memory_space<vmem>>, vector<64x128xbf16>,
    %c0_87 = arith.constant 0 : index
    %c128_88 = arith.constant 128 : index
    %134 = vector.load %arg17[%c0_87, %c128_88] : memref<64x256xbf16, #tpu.memory_space<vmem>>, vector<64x128xbf16>
    tpu.vector_store %arg17[%c0_87, %c128_88], %124 {strides = array<i32>} : memref<64x256xbf16, #tpu.memory_space<vmem>>, vector<64x128xbf16>,
    %c0_89 = arith.constant 0 : index
    %c0_90 = arith.constant 0 : index
    %135 = vector.load %arg17[%c0_89, %c0_90] : memref<64x256xbf16, #tpu.memory_space<vmem>>, vector<64x256xbf16>
    %c0_91 = arith.constant 0 : index
    %c0_92 = arith.constant 0 : index
    %136 = vector.load %arg14[%c0_91, %c0_92] : memref<256x128xbf16, #tpu.memory_space<vmem>>, vector<256x128xbf16>
    %cst_93 = arith.constant dense<0.000000e+00> : vector<64x128xf32>
    %137 = tpu.matmul %135, %136, %cst_93 {dimension_numbers = #tpu.dot_dimension_numbers<[1], [0], [0], [1], [0, 0, 1, 1], [], []>} : vector<64x256xbf16>, vector<256x128xbf16>, vector<64x128xf32> -> vector<64x128xf32>
    %c0_94 = arith.constant 0 : index
    %c0_95 = arith.constant 0 : index
    %138 = vector.load %arg15[%c0_94, %c0_95] : memref<1x128xf32, #tpu.memory_space<vmem>>, vector<1x128xf32>
    %139 = vector.broadcast %138 : vector<1x128xf32> to vector<64x128xf32>
    %140 = arith.addf %137, %139 : vector<64x128xf32>
    %cst_96 = arith.constant 0.000000e+00 : f32
    %141 = vector.broadcast %cst_96 : f32 to vector<64x128xf32>
    %142 = arith.maximumf %140, %141 : vector<64x128xf32>
    %143 = arith.addf %142, %104 : vector<64x128xf32>
    %cst_97 = arith.constant 0.000000e+00 : f32
    %144 = vector.broadcast %cst_97 : f32 to vector<64x128xf32>
    %145 = arith.maximumf %143, %144 : vector<64x128xf32>
    %c0_98 = arith.constant 0 : index
    %c0_99 = arith.constant 0 : index
    %146 = vector.load %arg16[%c0_98, %c0_99] : memref<64x128xf32, #tpu.memory_space<vmem>>, vector<64x128xf32>
    tpu.vector_store %arg16[%c0_98, %c0_99], %145 {strides = array<i32>} : memref<64x128xf32, #tpu.memory_space<vmem>>, vector<64x128xf32>,
    return
  }
  func.func @transform_0(%arg0: i32) -> (i32, i32) {
    %c0_i32 = arith.constant 0 : i32
    %c0_i32_0 = arith.constant 0 : i32
    return %arg0, %c0_i32 : i32, i32
  }
  func.func @transform_1(%arg0: i32) -> (i32, i32) {
    %c0_i32 = arith.constant 0 : i32
    %c0_i32_0 = arith.constant 0 : i32
    %c0_i32_1 = arith.constant 0 : i32
    return %c0_i32, %c0_i32_0 : i32, i32
  }
  func.func @transform_2(%arg0: i32) -> (i32, i32) {
    %c0_i32 = arith.constant 0 : i32
    %c0_i32_0 = arith.constant 0 : i32
    %c0_i32_1 = arith.constant 0 : i32
    return %c0_i32, %c0_i32_0 : i32, i32
  }
  func.func @transform_3(%arg0: i32) -> (i32, i32) {
    %c0_i32 = arith.constant 0 : i32
    %c0_i32_0 = arith.constant 0 : i32
    %c0_i32_1 = arith.constant 0 : i32
    return %c0_i32, %c0_i32_0 : i32, i32
  }
  func.func @transform_4(%arg0: i32) -> (i32, i32) {
    %c0_i32 = arith.constant 0 : i32
    %c0_i32_0 = arith.constant 0 : i32
    %c0_i32_1 = arith.constant 0 : i32
    return %c0_i32, %c0_i32_0 : i32, i32
  }
  func.func @transform_5(%arg0: i32) -> (i32, i32) {
    %c0_i32 = arith.constant 0 : i32
    %c0_i32_0 = arith.constant 0 : i32
    %c0_i32_1 = arith.constant 0 : i32
    return %c0_i32, %c0_i32_0 : i32, i32
  }
  func.func @transform_6(%arg0: i32) -> (i32, i32) {
    %c0_i32 = arith.constant 0 : i32
    %c0_i32_0 = arith.constant 0 : i32
    %c0_i32_1 = arith.constant 0 : i32
    return %c0_i32, %c0_i32_0 : i32, i32
  }
  func.func @transform_7(%arg0: i32) -> (i32, i32) {
    %c0_i32 = arith.constant 0 : i32
    %c0_i32_0 = arith.constant 0 : i32
    %c0_i32_1 = arith.constant 0 : i32
    return %c0_i32, %c0_i32_0 : i32, i32
  }
  func.func @transform_8(%arg0: i32) -> (i32, i32) {
    %c0_i32 = arith.constant 0 : i32
    %c0_i32_0 = arith.constant 0 : i32
    %c0_i32_1 = arith.constant 0 : i32
    return %c0_i32, %c0_i32_0 : i32, i32
  }
  func.func @transform_9(%arg0: i32) -> (i32, i32) {
    %c0_i32 = arith.constant 0 : i32
    %c0_i32_0 = arith.constant 0 : i32
    %c0_i32_1 = arith.constant 0 : i32
    return %c0_i32, %c0_i32_0 : i32, i32
  }
  func.func @transform_10(%arg0: i32) -> (i32, i32) {
    %c0_i32 = arith.constant 0 : i32
    %c0_i32_0 = arith.constant 0 : i32
    %c0_i32_1 = arith.constant 0 : i32
    return %c0_i32, %c0_i32_0 : i32, i32
  }
  func.func @transform_11(%arg0: i32) -> (i32, i32) {
    %c0_i32 = arith.constant 0 : i32
    %c0_i32_0 = arith.constant 0 : i32
    %c0_i32_1 = arith.constant 0 : i32
    return %c0_i32, %c0_i32_0 : i32, i32
  }
  func.func @transform_12(%arg0: i32) -> (i32, i32) {
    %c0_i32 = arith.constant 0 : i32
    %c0_i32_0 = arith.constant 0 : i32
    %c0_i32_1 = arith.constant 0 : i32
    return %c0_i32, %c0_i32_0 : i32, i32
  }
  func.func @transform_13(%arg0: i32) -> (i32, i32) {
    %c0_i32 = arith.constant 0 : i32
    %c0_i32_0 = arith.constant 0 : i32
    %c0_i32_1 = arith.constant 0 : i32
    return %c0_i32, %c0_i32_0 : i32, i32
  }
  func.func @transform_14(%arg0: i32) -> (i32, i32) {
    %c0_i32 = arith.constant 0 : i32
    %c0_i32_0 = arith.constant 0 : i32
    %c0_i32_1 = arith.constant 0 : i32
    return %c0_i32, %c0_i32_0 : i32, i32
  }
  func.func @transform_15(%arg0: i32) -> (i32, i32) {
    %c0_i32 = arith.constant 0 : i32
    %c0_i32_0 = arith.constant 0 : i32
    return %arg0, %c0_i32 : i32, i32
  }
}

</mosaic_0001>

<llo_original>
// kernel: tpu_custom_call.1
$region0: #{tpu_custom_call.1}
  #allocation0 [shape = 'u32[]', space=smem, size = 0x4, offset = 0x4, fixed_abs, tag = 'smem constant byte address 0x4 - core index']
  #allocation1 [shape = 'u32[144,128]{1,0:T(1,128)}', space=vmem, size = 0x12000, scoped, tag = 'internal scratch']
  #allocation2 [shape = 'bf16[64,256]{1,0:T(8,128)(2,1)}', space=vmem, size = 0x8000, scoped, tag = 'scratch operand']
  %s0 = inlined_call_operand.hbm [shape: f32[64,128], index: 0, kind: input, shape index: {}]
  %s1 = inlined_call_operand.hbm [shape: bf16[256,128], index: 1, kind: input, shape index: {}]
  %s2 = inlined_call_operand.vmem [shape: f32[1,128], index: 2, kind: input, shape index: {}]
  %s3 = inlined_call_operand.hbm [shape: bf16[256,128], index: 3, kind: input, shape index: {}]
  %s4 = inlined_call_operand.vmem [shape: f32[1,128], index: 4, kind: input, shape index: {}]
  %s5 = inlined_call_operand.hbm [shape: bf16[128,128], index: 5, kind: input, shape index: {}]
  %s6 = inlined_call_operand.vmem [shape: f32[1,128], index: 6, kind: input, shape index: {}]
  %s7 = inlined_call_operand.hbm [shape: bf16[256,128], index: 7, kind: input, shape index: {}]
  %s8 = inlined_call_operand.vmem [shape: f32[1,128], index: 8, kind: input, shape index: {}]
  %s9 = inlined_call_operand.hbm [shape: bf16[256,128], index: 9, kind: input, shape index: {}]
  %s10 = inlined_call_operand.vmem [shape: f32[1,128], index: 10, kind: input, shape index: {}]
  %s11 = inlined_call_operand.hbm [shape: bf16[256,128], index: 11, kind: input, shape index: {}]
  %s12 = inlined_call_operand.vmem [shape: f32[1,128], index: 12, kind: input, shape index: {}]
  %s13 = inlined_call_operand.hbm [shape: bf16[256,128], index: 13, kind: input, shape index: {}]
  %s14 = inlined_call_operand.vmem [shape: f32[1,128], index: 14, kind: input, shape index: {}]
  %s15 = inlined_call_operand.hbm [shape: f32[64,128], index: 15, kind: output, shape index: {}]
  %s16 = sld [smem:[#allocation0]]
  $region102: #{tpu_custom_call.1} parent=0
    _
  %s18 = ssub.s32 1, %s16
  %s19 = scalar_select 0, %s18, %s16
  $region1: #{tpu_custom_call.1} parent=0
    #allocation3 [shape = 'u8[32768]{0}', space=vmem, size = 0x8000, scoped, tag = 'input window, operand 0, single buffered']
    #allocation4 [shape = 's32[1]{0}', space=sflag, size = 0x4, scoped, tag = 'scoped memory for tpu_custom_call.1']
    #allocation5 [shape = 's32[1]{0}', space=sflag, size = 0x4, scoped, tag = 'scoped memory for tpu_custom_call.1']
    #allocation6 [shape = 'u8[65536]{0}', space=vmem, size = 0x10000, scoped, tag = 'input window, operand 1, single buffered']
    #allocation7 [shape = 's32[1]{0}', space=sflag, size = 0x4, scoped, tag = 'scoped memory for tpu_custom_call.1']
    #allocation8 [shape = 'u8[65536]{0}', space=vmem, size = 0x10000, scoped, tag = 'input window, operand 3, single buffered']
    #allocation9 [shape = 'u8[32768]{0}', space=vmem, size = 0x8000, scoped, tag = 'input window, operand 5, single buffered']
    #allocation10 [shape = 's32[1]{0}', space=sflag, size = 0x4, scoped, tag = 'scoped memory for tpu_custom_call.1']
    #allocation11 [shape = 'u8[65536]{0}', space=vmem, size = 0x10000, scoped, tag = 'input window, operand 7, single buffered']
    #allocation12 [shape = 'u8[65536]{0}', space=vmem, size = 0x10000, scoped, tag = 'input window, operand 9, single buffered']
    #allocation13 [shape = 's32[1]{0}', space=sflag, size = 0x4, scoped, tag = 'scoped memory for tpu_custom_call.1']
    #allocation14 [shape = 'u8[65536]{0}', space=vmem, size = 0x10000, scoped, tag = 'input window, operand 11, single buffered']
    #allocation15 [shape = 'u8[65536]{0}', space=vmem, size = 0x10000, scoped, tag = 'input window, operand 13, single buffered']
    #allocation16 [shape = 's32[1]{0}', space=sflag, size = 0x4, scoped, tag = 'scoped memory for tpu_custom_call.1']
    #allocation17 [shape = 'u8[32768]{0}', space=vmem, size = 0x8000, scoped, tag = 'output window, operand 0, single buffered']
    %20 = vsyncpa [#allocation4], 0
    %21 = vsyncpa [#allocation7], 0
    %22 = vsyncpa [#allocation10], 0
    %23 = vsyncpa [#allocation13], 0
    %24 = vsyncpa [#allocation16], 0
    %25 = vsyncpa [#allocation5], 0
    // Predicated region
    $region2: #{tpu_custom_call.1} parent=1 // pred_check
      _
    $region3: #{tpu_custom_call.1} parent=1 // pred_check_branch
      %27 = sbr.rel (0) target = $region5
    $region4: #{tpu_custom_call.1} parent=1 // pred_region
      %s29 = ssub.s32 1024, 1024
      %30 = vsyncadd [#allocation4], %s29
      %s31 = sshll.u32 [#allocation3], 4
      %s32 = int_to_ptr.vmem [resolvable:$true] %s31
      %37 = dma.hbm_to_vmem [thread:$0]  %s0, 1024, %s32, [#allocation4], 128, 128, 8
    $region5: #{tpu_custom_call.1} parent=1 // pred_fallthru
      _
    // Predicated region
    $region6: #{tpu_custom_call.1} parent=1 // pred_check
      _
    $region7: #{tpu_custom_call.1} parent=1 // pred_check_branch
      %39 = sbr.rel (0) target = $region9
    $region8: #{tpu_custom_call.1} parent=1 // pred_region
      %s41 = ssub.s32 2048, 2048
      %42 = vsyncadd [#allocation7], %s41
      %s43 = sshll.u32 [#allocation6], 4
      %s44 = int_to_ptr.vmem [resolvable:$true] %s43
      %49 = dma.hbm_to_vmem [thread:$0]  %s1, 2048, %s44, [#allocation7], 64, 64, 4
    $region9: #{tpu_custom_call.1} parent=1 // pred_fallthru
      _
    // Predicated region
    $region10: #{tpu_custom_call.1} parent=1 // pred_check
      _
    $region11: #{tpu_custom_call.1} parent=1 // pred_check_branch
      %51 = sbr.rel (0) target = $region13
    $region12: #{tpu_custom_call.1} parent=1 // pred_region
      _
    $region13: #{tpu_custom_call.1} parent=1 // pred_fallthru
      _
    // Predicated region
    $region14: #{tpu_custom_call.1} parent=1 // pred_check
      _
    $region15: #{tpu_custom_call.1} parent=1 // pred_check_branch
      %53 = sbr.rel (0) target = $region17
    $region16: #{tpu_custom_call.1} parent=1 // pred_region
      %s55 = ssub.s32 2048, 2048
      %56 = vsyncadd [#allocation7], %s55
      %s57 = sshll.u32 [#allocation8], 4
      %s58 = int_to_ptr.vmem [resolvable:$true] %s57
      %63 = dma.hbm_to_vmem [thread:$0]  %s3, 2048, %s58, [#allocation7], 64, 64, 4
    $region17: #{tpu_custom_call.1} parent=1 // pred_fallthru
      _
    // Predicated region
    $region18: #{tpu_custom_call.1} parent=1 // pred_check
      _
    $region19: #{tpu_custom_call.1} parent=1 // pred_check_branch
      %65 = sbr.rel (0) target = $region21
    $region20: #{tpu_custom_call.1} parent=1 // pred_region
      _
    $region21: #{tpu_custom_call.1} parent=1 // pred_fallthru
      _
    // Predicated region
    $region22: #{tpu_custom_call.1} parent=1 // pred_check
      _
    $region23: #{tpu_custom_call.1} parent=1 // pred_check_branch
      %67 = sbr.rel (0) target = $region25
    $region24: #{tpu_custom_call.1} parent=1 // pred_region
      %s69 = ssub.s32 1024, 1024
      %70 = vsyncadd [#allocation10], %s69
      %s71 = sshll.u32 [#allocation9], 4
      %s72 = int_to_ptr.vmem [resolvable:$true] %s71
      %77 = dma.hbm_to_vmem [thread:$0]  %s5, 1024, %s72, [#allocation10], 64, 64, 4
    $region25: #{tpu_custom_call.1} parent=1 // pred_fallthru
      _
    // Predicated region
    $region26: #{tpu_custom_call.1} parent=1 // pred_check
      _
    $region27: #{tpu_custom_call.1} parent=1 // pred_check_branch
      %79 = sbr.rel (0) target = $region29
    $region28: #{tpu_custom_call.1} parent=1 // pred_region
      _
    $region29: #{tpu_custom_call.1} parent=1 // pred_fallthru
      _
    // Predicated region
    $region30: #{tpu_custom_call.1} parent=1 // pred_check
      _
    $region31: #{tpu_custom_call.1} parent=1 // pred_check_branch
      %81 = sbr.rel (0) target = $region33
    $region32: #{tpu_custom_call.1} parent=1 // pred_region
      %s83 = ssub.s32 2048, 2048
      %84 = vsyncadd [#allocation10], %s83
      %s85 = sshll.u32 [#allocation11], 4
      %s86 = int_to_ptr.vmem [resolvable:$true] %s85
      %91 = dma.hbm_to_vmem [thread:$0]  %s7, 2048, %s86, [#allocation10], 64, 64, 4
    $region33: #{tpu_custom_call.1} parent=1 // pred_fallthru
      _
    // Predicated region
    $region34: #{tpu_custom_call.1} parent=1 // pred_check
      _
    $region35: #{tpu_custom_call.1} parent=1 // pred_check_branch
      %93 = sbr.rel (0) target = $region37
    $region36: #{tpu_custom_call.1} parent=1 // pred_region
      _
    $region37: #{tpu_custom_call.1} parent=1 // pred_fallthru
      _
    // Predicated region
    $region38: #{tpu_custom_call.1} parent=1 // pred_check
      _
    $region39: #{tpu_custom_call.1} parent=1 // pred_check_branch
      %95 = sbr.rel (0) target = $region41
    $region40: #{tpu_custom_call.1} parent=1 // pred_region
      %s97 = ssub.s32 2048, 2048
      %98 = vsyncadd [#allocation13], %s97
      %s99 = sshll.u32 [#allocation12], 4
      %s100 = int_to_ptr.vmem [resolvable:$true] %s99
      %105 = dma.hbm_to_vmem [thread:$0]  %s9, 2048, %s100, [#allocation13], 64, 64, 4
    $region41: #{tpu_custom_call.1} parent=1 // pred_fallthru
      _
    // Predicated region
    $region42: #{tpu_custom_call.1} parent=1 // pred_check
      _
    $region43: #{tpu_custom_call.1} parent=1 // pred_check_branch
      %107 = sbr.rel (0) target = $region45
    $region44: #{tpu_custom_call.1} parent=1 // pred_region
      _
    $region45: #{tpu_custom_call.1} parent=1 // pred_fallthru
      _
    // Predicated region
    $region46: #{tpu_custom_call.1} parent=1 // pred_check
      _
    $region47: #{tpu_custom_call.1} parent=1 // pred_check_branch
      %109 = sbr.rel (0) target = $region49
    $region48: #{tpu_custom_call.1} parent=1 // pred_region
      %s111 = ssub.s32 2048, 2048
      %112 = vsyncadd [#allocation13], %s111
      %s113 = sshll.u32 [#allocation14], 4
      %s114 = int_to_ptr.vmem [resolvable:$true] %s113
      %119 = dma.hbm_to_vmem [thread:$0]  %s11, 2048, %s114, [#allocation13], 64, 64, 4
    $region49: #{tpu_custom_call.1} parent=1 // pred_fallthru
      _
    // Predicated region
    $region50: #{tpu_custom_call.1} parent=1 // pred_check
      _
    $region51: #{tpu_custom_call.1} parent=1 // pred_check_branch
      %121 = sbr.rel (0) target = $region53
    $region52: #{tpu_custom_call.1} parent=1 // pred_region
      _
    $region53: #{tpu_custom_call.1} parent=1 // pred_fallthru
      _
    // Predicated region
    $region54: #{tpu_custom_call.1} parent=1 // pred_check
      _
    $region55: #{tpu_custom_call.1} parent=1 // pred_check_branch
      %123 = sbr.rel (0) target = $region57
    $region56: #{tpu_custom_call.1} parent=1 // pred_region
      %s125 = ssub.s32 2048, 2048
      %126 = vsyncadd [#allocation16], %s125
      %s127 = sshll.u32 [#allocation15], 4
      %s128 = int_to_ptr.vmem [resolvable:$true] %s127
      %133 = dma.hbm_to_vmem [thread:$0]  %s13, 2048, %s128, [#allocation16], 64, 64, 4
    $region57: #{tpu_custom_call.1} parent=1 // pred_fallthru
      _
    // Predicated region
    $region58: #{tpu_custom_call.1} parent=1 // pred_check
      _
    $region59: #{tpu_custom_call.1} parent=1 // pred_check_branch
      %135 = sbr.rel (0) target = $region61
    $region60: #{tpu_custom_call.1} parent=1 // pred_region
      _
    $region61: #{tpu_custom_call.1} parent=1 // pred_fallthru
      _
    // Predicated region
    $region62: #{tpu_custom_call.1} parent=1 // pred_check
      _
    $region63: #{tpu_custom_call.1} parent=1 // pred_check_branch
      %137 = sbr.rel (0) target = $region65
    $region64: #{tpu_custom_call.1} parent=1 // pred_region
      %138 = dma.done [#allocation4], 1024
    $region65: #{tpu_custom_call.1} parent=1 // pred_fallthru
      _
    // Predicated region
    $region66: #{tpu_custom_call.1} parent=1 // pred_check
      _
    $region67: #{tpu_custom_call.1} parent=1 // pred_check_branch
      %140 = sbr.rel (0) target = $region69
    $region68: #{tpu_custom_call.1} parent=1 // pred_region
      %141 = dma.done [#allocation7], 2048
    $region69: #{tpu_custom_call.1} parent=1 // pred_fallthru
      _
    // Predicated region
    $region70: #{tpu_custom_call.1} parent=1 // pred_check
      _
    $region71: #{tpu_custom_call.1} parent=1 // pred_check_branch
      %143 = sbr.rel (0) target = $region73
    $region72: #{tpu_custom_call.1} parent=1 // pred_region
      %144 = dma.done [#allocation7], 2048
    $region73: #{tpu_custom_call.1} parent=1 // pred_fallthru
      _
    // Predicated region
    $region74: #{tpu_custom_call.1} parent=1 // pred_check
      _
    $region75: #{tpu_custom_call.1} parent=1 // pred_check_branch
      %146 = sbr.rel (0) target = $region77
    $region76: #{tpu_custom_call.1} parent=1 // pred_region
      %147 = dma.done [#allocation10], 1024
    $region77: #{tpu_custom_call.1} parent=1 // pred_fallthru
      _
    // Predicated region
    $region78: #{tpu_custom_call.1} parent=1 // pred_check
      _
    $region79: #{tpu_custom_call.1} parent=1 // pred_check_branch
      %149 = sbr.rel (0) target = $region81
    $region80: #{tpu_custom_call.1} parent=1 // pred_region
      %150 = dma.done [#allocation10], 2048
    $region81: #{tpu_custom_call.1} parent=1 // pred_fallthru
      _
    // Predicated region
    $region82: #{tpu_custom_call.1} parent=1 // pred_check
      _
    $region83: #{tpu_custom_call.1} parent=1 // pred_check_branch
      %152 = sbr.rel (0) target = $region85
    $region84: #{tpu_custom_call.1} parent=1 // pred_region
      %153 = dma.done [#allocation13], 2048
    $region85: #{tpu_custom_call.1} parent=1 // pred_fallthru
      _
    // Predicated region
    $region86: #{tpu_custom_call.1} parent=1 // pred_check
      _
    $region87: #{tpu_custom_call.1} parent=1 // pred_check_branch
      %155 = sbr.rel (0) target = $region89
    $region88: #{tpu_custom_call.1} parent=1 // pred_region
      %156 = dma.done [#allocation13], 2048
    $region89: #{tpu_custom_call.1} parent=1 // pred_fallthru
      _
    // Predicated region
    $region90: #{tpu_custom_call.1} parent=1 // pred_check
      _
    $region91: #{tpu_custom_call.1} parent=1 // pred_check_branch
      %158 = sbr.rel (0) target = $region93
    $region92: #{tpu_custom_call.1} parent=1 // pred_region
      %159 = dma.done [#allocation16], 2048
    $region93: #{tpu_custom_call.1} parent=1 // pred_fallthru
      _
    %v161 = vlaneseq
    %v162 = vshrl.u32 %v161, 7
    %v163 = vadd.s32 %v162, 8
    %v164 = vadd.s32 %v162, 16
    %v165 = vadd.s32 %v162, 24
    %v166 = vadd.s32 %v162, 32
    %v167 = vadd.s32 %v162, 40
    %v168 = vadd.s32 %v162, 48
    %v169 = vadd.s32 %v162, 56
    %vm170 = vcmp.lt.s32.totalorder %v162, 0
    %v171 = vsub.s32 0, %v162
    %v172 = vsel %vm170, %v171, %v162
    %v173 = vshrl.u32 %v172, 4
    %v174 = vand.u32 %v172, 15
    %v175 = vsub.s32 0, %v174
    %v176 = vsel %vm170, %v175, %v174
    %vm177 = vcmp.lt.s32.totalorder %v163, 0
    %v178 = vsub.s32 0, %v163
    %v179 = vsel %vm177, %v178, %v163
    %v180 = vshrl.u32 %v179, 4
    %v181 = vand.u32 %v179, 15
    %v182 = vsub.s32 0, %v181
    %v183 = vsel %vm177, %v182, %v181
    %vm184 = vcmp.lt.s32.totalorder %v164, 0
    %v185 = vsub.s32 0, %v164
    %v186 = vsel %vm184, %v185, %v164
    %v187 = vshrl.u32 %v186, 4
    %v188 = vand.u32 %v186, 15
    %v189 = vsub.s32 0, %v188
    %v190 = vsel %vm184, %v189, %v188
    %vm191 = vcmp.lt.s32.totalorder %v165, 0
    %v192 = vsub.s32 0, %v165
    %v193 = vsel %vm191, %v192, %v165
    %v194 = vshrl.u32 %v193, 4
    %v195 = vand.u32 %v193, 15
    %v196 = vsub.s32 0, %v195
    %v197 = vsel %vm191, %v196, %v195
    %vm198 = vcmp.lt.s32.totalorder %v166, 0
    %v199 = vsub.s32 0, %v166
    %v200 = vsel %vm198, %v199, %v166
    %v201 = vshrl.u32 %v200, 4
    %v202 = vand.u32 %v200, 15
    %v203 = vsub.s32 0, %v202
    %v204 = vsel %vm198, %v203, %v202
    %vm205 = vcmp.lt.s32.totalorder %v167, 0
    %v206 = vsub.s32 0, %v167
    %v207 = vsel %vm205, %v206, %v167
    %v208 = vshrl.u32 %v207, 4
    %v209 = vand.u32 %v207, 15
    %v210 = vsub.s32 0, %v209
    %v211 = vsel %vm205, %v210, %v209
    %vm212 = vcmp.lt.s32.totalorder %v168, 0
    %v213 = vsub.s32 0, %v168
    %v214 = vsel %vm212, %v213, %v168
    %v215 = vshrl.u32 %v214, 4
    %v216 = vand.u32 %v214, 15
    %v217 = vsub.s32 0, %v216
    %v218 = vsel %vm212, %v217, %v216
    %vm219 = vcmp.lt.s32.totalorder %v169, 0
    %v220 = vsub.s32 0, %v169
    %v221 = vsel %vm219, %v220, %v169
    %v222 = vshrl.u32 %v221, 4
    %v223 = vand.u32 %v221, 15
    %v224 = vsub.s32 0, %v223
    %v225 = vsel %vm219, %v224, %v223
    %vm226 = vcmp.ne.s32.totalorder %v176, 0
    %vm227 = vcmp.ne.s32.totalorder %v183, 0
    %vm228 = vcmp.ne.s32.totalorder %v190, 0
    %vm229 = vcmp.ne.s32.totalorder %v197, 0
    %vm230 = vcmp.ne.s32.totalorder %v204, 0
    %vm231 = vcmp.ne.s32.totalorder %v211, 0
    %vm232 = vcmp.ne.s32.totalorder %v218, 0
    %vm233 = vcmp.ne.s32.totalorder %v225, 0
    %vm234 = vcmp.lt.s32.totalorder %v176, 0
    %vm235 = vcmp.lt.s32.totalorder %v183, 0
    %vm236 = vcmp.lt.s32.totalorder %v190, 0
    %vm237 = vcmp.lt.s32.totalorder %v197, 0
    %vm238 = vcmp.lt.s32.totalorder %v204, 0
    %vm239 = vcmp.lt.s32.totalorder %v211, 0
    %vm240 = vcmp.lt.s32.totalorder %v218, 0
    %vm241 = vcmp.lt.s32.totalorder %v225, 0
    %vm242 = vmand %vm234, %vm226
    %vm243 = vmand %vm235, %vm227
    %vm244 = vmand %vm236, %vm228
    %vm245 = vmand %vm237, %vm229
    %vm246 = vmand %vm238, %vm230
    %vm247 = vmand %vm239, %vm231
    %vm248 = vmand %vm240, %vm232
    %vm249 = vmand %vm241, %vm233
    %v250 = vadd.s32 %v176, 16
    %v251 = vadd.s32 %v183, 16
    %v252 = vadd.s32 %v190, 16
    %v253 = vadd.s32 %v197, 16
    %v254 = vadd.s32 %v204, 16
    %v255 = vadd.s32 %v211, 16
    %v256 = vadd.s32 %v218, 16
    %v257 = vadd.s32 %v225, 16
    %v258 = vsel %vm242, %v250, %v176
    %v259 = vsel %vm243, %v251, %v183
    %v260 = vsel %vm244, %v252, %v190
    %v261 = vsel %vm245, %v253, %v197
    %v262 = vsel %vm246, %v254, %v204
    %v263 = vsel %vm247, %v255, %v211
    %v264 = vsel %vm248, %v256, %v218
    %v265 = vsel %vm249, %v257, %v225
    %v266 = vld [vmem:[#allocation3] sm:$0xff]
    %v267 = vld [vmem:[#allocation3 + $0x8] sm:$0xff]
    %v268 = vld [vmem:[#allocation3 + $0x10] sm:$0xff]
    %v269 = vld [vmem:[#allocation3 + $0x18] sm:$0xff]
    %v270 = vld [vmem:[#allocation3 + $0x20] sm:$0xff]
    %v271 = vld [vmem:[#allocation3 + $0x28] sm:$0xff]
    %v272 = vld [vmem:[#allocation3 + $0x30] sm:$0xff]
    %v273 = vld [vmem:[#allocation3 + $0x38] sm:$0xff]
    %v274 = vpack.c.bf16 %v267, %v266
    %v275 = vpack.c.bf16 %v269, %v268
    %v276 = vpack.c.bf16 %v271, %v270
    %v277 = vpack.c.bf16 %v273, %v272
    %v278 = vrot.slane %v266, 7
    %v279 = vrot.slane %v267, 7
    %v280 = vrot.slane %v268, 7
    %v281 = vrot.slane %v269, 7
    %v282 = vrot.slane %v270, 7
    %v283 = vrot.slane %v271, 7
    %v284 = vrot.slane %v272, 7
    %v285 = vrot.slane %v273, 7
    %vm286 = vcmp.lt.s32.totalorder %v162, 1
    %v287 = vsel %vm286, %v284, %v285
    %v288 = vsel %vm286, %v283, %v284
    %v289 = vsel %vm286, %v282, %v283
    %v290 = vsel %vm286, %v281, %v282
    %v291 = vsel %vm286, %v280, %v281
    %v292 = vsel %vm286, %v279, %v280
    %v293 = vsel %vm286, %v278, %v279
    %v294 = vsel %vm286, %v285, %v278
    %vm295 = vcmp.ge.s32.totalorder %v258, 1
    %vm296 = vcmp.ge.s32.totalorder %v259, 1
    %vm297 = vcmp.ge.s32.totalorder %v260, 1
    %vm298 = vcmp.ge.s32.totalorder %v261, 1
    %vm299 = vcmp.ge.s32.totalorder %v262, 1
    %vm300 = vcmp.ge.s32.totalorder %v263, 1
    %vm301 = vcmp.ge.s32.totalorder %v264, 1
    %vm302 = vcmp.ge.s32.totalorder %v265, 1
    %v303 = vsel %vm295, 1, 0
    %v304 = vsel %vm296, 1, 0
    %v305 = vsel %vm297, 1, 0
    %v306 = vsel %vm298, 1, 0
    %v307 = vsel %vm299, 1, 0
    %v308 = vsel %vm300, 1, 0
    %v309 = vsel %vm301, 1, 0
    %v310 = vsel %vm302, 1, 0
    %vm311 = vcmp.eq.s32.totalorder %v303, 1
    %vm312 = vcmp.eq.s32.totalorder %v304, 1
    %vm313 = vcmp.eq.s32.totalorder %v305, 1
    %vm314 = vcmp.eq.s32.totalorder %v306, 1
    %vm315 = vcmp.eq.s32.totalorder %v307, 1
    %vm316 = vcmp.eq.s32.totalorder %v308, 1
    %vm317 = vcmp.eq.s32.totalorder %v309, 1
    %vm318 = vcmp.eq.s32.totalorder %v310, 1
    %v319 = vsel %vm311, %v294, 0.0
    %v320 = vsel %vm312, %v293, 0.0
    %v321 = vsel %vm313, %v292, 0.0
    %v322 = vsel %vm314, %v291, 0.0
    %v323 = vsel %vm315, %v290, 0.0
    %v324 = vsel %vm316, %v289, 0.0
    %v325 = vsel %vm317, %v288, 0.0
    %v326 = vsel %vm318, %v287, 0.0
    %v327 = vpack.c.bf16 %v320, %v319
    %v328 = vpack.c.bf16 %v322, %v321
    %v329 = vpack.c.bf16 %v324, %v323
    %v330 = vpack.c.bf16 %v326, %v325
    %v335 = vunpack.c.l.b16 %v327
    %v336 = vunpack.c.h.b16 %v327
    %v337 = vunpack.c.l.b16 %v328
    %v338 = vunpack.c.h.b16 %v328
    %v339 = vunpack.c.l.b16 %v329
    %v340 = vunpack.c.h.b16 %v329
    %v341 = vunpack.c.l.b16 %v330
    %v342 = vunpack.c.h.b16 %v330
    %v343 = vpack.c.b16 %v335, %v335
    %v344 = vpack.c.b16 %v336, %v336
    %v345 = vpack.c.b16 %v337, %v337
    %v346 = vpack.c.b16 %v338, %v338
    %v347 = vpack.c.b16 %v339, %v339
    %v348 = vpack.c.b16 %v340, %v340
    %v349 = vpack.c.b16 %v341, %v341
    %v350 = vpack.c.b16 %v342, %v342
    %359 = vst [vmem:[#allocation2] sm:$0xf] %v343
    %360 = vst [vmem:[#allocation2 + $0x8] sm:$0xf] %v344
    %361 = vst [vmem:[#allocation2 + $0x10] sm:$0xf] %v345
    %362 = vst [vmem:[#allocation2 + $0x18] sm:$0xf] %v346
    %363 = vst [vmem:[#allocation2 + $0x20] sm:$0xf] %v347
    %364 = vst [vmem:[#allocation2 + $0x28] sm:$0xf] %v348
    %365 = vst [vmem:[#allocation2 + $0x30] sm:$0xf] %v349
    %366 = vst [vmem:[#allocation2 + $0x38] sm:$0xf] %v350
    %v371 = vunpack.c.l.b16 %v274
    %v372 = vunpack.c.h.b16 %v274
    %v373 = vunpack.c.l.b16 %v275
    %v374 = vunpack.c.h.b16 %v275
    %v375 = vunpack.c.l.b16 %v276
    %v376 = vunpack.c.h.b16 %v276
    %v377 = vunpack.c.l.b16 %v277
    %v378 = vunpack.c.h.b16 %v277
    %v379 = vpack.c.b16 %v371, %v371
    %v380 = vpack.c.b16 %v372, %v372
    %v381 = vpack.c.b16 %v373, %v373
    %v382 = vpack.c.b16 %v374, %v374
    %v383 = vpack.c.b16 %v375, %v375
    %v384 = vpack.c.b16 %v376, %v376
    %v385 = vpack.c.b16 %v377, %v377
    %v386 = vpack.c.b16 %v378, %v378
    %395 = vst [vmem:[#allocation2 + $0x4] sm:$0xf] %v379
    %396 = vst [vmem:[#allocation2 + $0xc] sm:$0xf] %v380
    %397 = vst [vmem:[#allocation2 + $0x14] sm:$0xf] %v381
    %398 = vst [vmem:[#allocation2 + $0x1c] sm:$0xf] %v382
    %399 = vst [vmem:[#allocation2 + $0x24] sm:$0xf] %v383
    %400 = vst [vmem:[#allocation2 + $0x2c] sm:$0xf] %v384
    %401 = vst [vmem:[#allocation2 + $0x34] sm:$0xf] %v385
    %402 = vst [vmem:[#allocation2 + $0x3c] sm:$0xf] %v386
    %v403 = vld [vmem:[#allocation2] sm:$0xff]
    %v404 = vld [vmem:[#allocation2 + $0x8] sm:$0xff]
    %v405 = vld [vmem:[#allocation2 + $0x10] sm:$0xff]
    %v406 = vld [vmem:[#allocation2 + $0x18] sm:$0xff]
    %v407 = vld [vmem:[#allocation2 + $0x20] sm:$0xff]
    %v408 = vld [vmem:[#allocation2 + $0x28] sm:$0xff]
    %v409 = vld [vmem:[#allocation2 + $0x30] sm:$0xff]
    %v410 = vld [vmem:[#allocation2 + $0x38] sm:$0xff]
    %v411 = vld [vmem:[#allocation6] sm:$0xf]
    %v412 = vld [vmem:[#allocation6 + $0x4] sm:$0xf]
    %v413 = vld [vmem:[#allocation6 + $0x8] sm:$0xf]
    %v414 = vld [vmem:[#allocation6 + $0xc] sm:$0xf]
    %v415 = vld [vmem:[#allocation6 + $0x10] sm:$0xf]
    %v416 = vld [vmem:[#allocation6 + $0x14] sm:$0xf]
    %v417 = vld [vmem:[#allocation6 + $0x18] sm:$0xf]
    %v418 = vld [vmem:[#allocation6 + $0x1c] sm:$0xf]
    %v419 = vld [vmem:[#allocation6 + $0x20] sm:$0xf]
    %v420 = vld [vmem:[#allocation6 + $0x24] sm:$0xf]
    %v421 = vld [vmem:[#allocation6 + $0x28] sm:$0xf]
    %v422 = vld [vmem:[#allocation6 + $0x2c] sm:$0xf]
    %v423 = vld [vmem:[#allocation6 + $0x30] sm:$0xf]
    %v424 = vld [vmem:[#allocation6 + $0x34] sm:$0xf]
    %v425 = vld [vmem:[#allocation6 + $0x38] sm:$0xf]
    %v426 = vld [vmem:[#allocation6 + $0x3c] sm:$0xf]
    %v427 = vld [vmem:[#allocation6 + $0x40] sm:$0xf]
    %v428 = vld [vmem:[#allocation6 + $0x44] sm:$0xf]
    %v429 = vld [vmem:[#allocation6 + $0x48] sm:$0xf]
    %v430 = vld [vmem:[#allocation6 + $0x4c] sm:$0xf]
    %v431 = vld [vmem:[#allocation6 + $0x50] sm:$0xf]
    %v432 = vld [vmem:[#allocation6 + $0x54] sm:$0xf]
    %v433 = vld [vmem:[#allocation6 + $0x58] sm:$0xf]
    %v434 = vld [vmem:[#allocation6 + $0x5c] sm:$0xf]
    %v435 = vld [vmem:[#allocation6 + $0x60] sm:$0xf]
    %v436 = vld [vmem:[#allocation6 + $0x64] sm:$0xf]
    %v437 = vld [vmem:[#allocation6 + $0x68] sm:$0xf]
    %v438 = vld [vmem:[#allocation6 + $0x6c] sm:$0xf]
    %v439 = vld [vmem:[#allocation6 + $0x70] sm:$0xf]
    %v440 = vld [vmem:[#allocation6 + $0x74] sm:$0xf]
    %v441 = vld [vmem:[#allocation6 + $0x78] sm:$0xf]
    %v442 = vld [vmem:[#allocation6 + $0x7c] sm:$0xf]
    %v443 = vld [vmem:[%s2] sm:$0x1]
    %v445 = vlaneseq
    %v446 = vshrl.u32 %v445, 7
    %v447 = vsub.s32 0, %v446
    %v448 = vrot.slane %v443, %v447
    %v458 = vunpack.c.l.b16 %v403
    %v459 = vunpack.c.h.b16 %v403
    %v460 = vunpack.c.l.b16 %v404
    %v461 = vunpack.c.h.b16 %v404
    %v462 = vunpack.c.l.b16 %v405
    %v463 = vunpack.c.h.b16 %v405
    %v464 = vunpack.c.l.b16 %v406
    %v465 = vunpack.c.h.b16 %v406
    %v466 = vunpack.c.l.b16 %v407
    %v467 = vunpack.c.h.b16 %v407
    %v468 = vunpack.c.l.b16 %v408
    %v469 = vunpack.c.h.b16 %v408
    %v470 = vunpack.c.l.b16 %v409
    %v471 = vunpack.c.h.b16 %v409
    %v472 = vunpack.c.l.b16 %v410
    %v473 = vunpack.c.h.b16 %v410
    %v474 = vpack.c.b16 %v460, %v458
    %v475 = vpack.c.b16 %v461, %v459
    %v476 = vpack.c.b16 %v464, %v462
    %v477 = vpack.c.b16 %v465, %v463
    %v478 = vpack.c.b16 %v468, %v466
    %v479 = vpack.c.b16 %v469, %v467
    %v480 = vpack.c.b16 %v472, %v470
    %v481 = vpack.c.b16 %v473, %v471
    %v522 = vunpack.c.l.b16 %v411
    %v523 = vunpack.c.l.b16 %v412
    %v524 = vunpack.c.l.b16 %v413
    %v525 = vunpack.c.l.b16 %v414
    %v526 = vunpack.c.l.b16 %v415
    %v527 = vunpack.c.l.b16 %v416
    %v528 = vunpack.c.l.b16 %v417
    %v529 = vunpack.c.l.b16 %v418
    %v530 = vunpack.c.l.b16 %v419
    %v531 = vunpack.c.l.b16 %v420
    %v532 = vunpack.c.l.b16 %v421
    %v533 = vunpack.c.l.b16 %v422
    %v534 = vunpack.c.l.b16 %v423
    %v535 = vunpack.c.l.b16 %v424
    %v536 = vunpack.c.l.b16 %v425
    %v537 = vunpack.c.l.b16 %v426
    %v538 = vunpack.c.l.b16 %v427
    %v539 = vunpack.c.l.b16 %v428
    %v540 = vunpack.c.l.b16 %v429
    %v541 = vunpack.c.l.b16 %v430
    %v542 = vunpack.c.l.b16 %v431
    %v543 = vunpack.c.l.b16 %v432
    %v544 = vunpack.c.l.b16 %v433
    %v545 = vunpack.c.l.b16 %v434
    %v546 = vunpack.c.l.b16 %v435
    %v547 = vunpack.c.l.b16 %v436
    %v548 = vunpack.c.l.b16 %v437
    %v549 = vunpack.c.l.b16 %v438
    %v550 = vunpack.c.l.b16 %v439
    %v551 = vunpack.c.l.b16 %v440
    %v552 = vunpack.c.l.b16 %v441
    %v553 = vunpack.c.l.b16 %v442
    %v554 = vpack.c.b16 %v523, %v522
    %v555 = vpack.c.b16 %v525, %v524
    %v556 = vpack.c.b16 %v527, %v526
    %v557 = vpack.c.b16 %v529, %v528
    %v558 = vpack.c.b16 %v531, %v530
    %v559 = vpack.c.b16 %v533, %v532
    %v560 = vpack.c.b16 %v535, %v534
    %v561 = vpack.c.b16 %v537, %v536
    %v562 = vpack.c.b16 %v539, %v538
    %v563 = vpack.c.b16 %v541, %v540
    %v564 = vpack.c.b16 %v543, %v542
    %v565 = vpack.c.b16 %v545, %v544
    %v566 = vpack.c.b16 %v547, %v546
    %v567 = vpack.c.b16 %v549, %v548
    %v568 = vpack.c.b16 %v551, %v550
    %v569 = vpack.c.b16 %v553, %v552
    %586 = vmatprep.subr.bf16.mxu0 0
    %587 = vmatpush1.bf16.msra.mxu0 %v561
    %588 = vmatprep.subr.bf16.mxu0 0
    %589 = vmatpush1.bf16.msra.mxu0 %v560
    %590 = vmatprep.subr.bf16.mxu0 0
    %591 = vmatpush1.bf16.msra.mxu0 %v559
    %592 = vmatprep.subr.bf16.mxu0 0
    %593 = vmatpush1.bf16.msra.mxu0 %v558
    %594 = vmatprep.subr.bf16.mxu0 0
    %595 = vmatpush1.bf16.msra.mxu0 %v557
    %596 = vmatprep.subr.bf16.mxu0 0
    %597 = vmatpush1.bf16.msra.mxu0 %v556
    %598 = vmatprep.subr.bf16.mxu0 0
    %599 = vmatpush1.bf16.msra.mxu0 %v555
    %600 = vmatprep.subr.bf16.mxu0 0
    %601 = vmatpush1.bf16.msra.mxu0 %v554
    %602 = vmatprep.subr.bf16.mxu0 0
    %603 = vmatpush2.bf16.msra.mxu0 %v569
    %604 = vmatprep.subr.bf16.mxu0 0
    %605 = vmatpush2.bf16.msra.mxu0 %v568
    %606 = vmatprep.subr.bf16.mxu0 0
    %607 = vmatpush2.bf16.msra.mxu0 %v567
    %608 = vmatprep.subr.bf16.mxu0 0
    %609 = vmatpush2.bf16.msra.mxu0 %v566
    %610 = vmatprep.subr.bf16.mxu0 0
    %611 = vmatpush2.bf16.msra.mxu0 %v565
    %612 = vmatprep.subr.bf16.mxu0 0
    %613 = vmatpush2.bf16.msra.mxu0 %v564
    %614 = vmatprep.subr.bf16.mxu0 0
    %615 = vmatpush2.bf16.msra.mxu0 %v563
    %616 = vmatprep.subr.bf16.mxu0 0
    %617 = vmatpush2.bf16.msra.mxu0 %v562
    %618 = vmatprep.mubr.bf16.mxu0 %v475
    %619 = vmatmul.mubr.bf16.gmra.mxu0 %v474
    %v620 = vpop.f32.mrf.mxu0
    %v621 = vadd.f32 %v448, %v620
    %v622 = vpop.f32.mrf.mxu0
    %v623 = vpop.f32.mrf.mxu0
    %v624 = vadd.f32 %v448, %v623
    %v625 = vpop.f32.mrf.mxu0
    %626 = vmatprep.mubr.bf16.mxu0 %v477
    %627 = vmatmul.mubr.bf16.gmra.mxu0 %v476
    %v628 = vpop.f32.mrf.mxu0
    %v629 = vadd.f32 %v448, %v628
    %v630 = vpop.f32.mrf.mxu0
    %v631 = vpop.f32.mrf.mxu0
    %v632 = vadd.f32 %v448, %v631
    %v633 = vpop.f32.mrf.mxu0
    %634 = vmatprep.mubr.bf16.mxu0 %v479
    %635 = vmatmul.mubr.bf16.gmra.mxu0 %v478
    %v636 = vpop.f32.mrf.mxu0
    %v637 = vadd.f32 %v448, %v636
    %v638 = vpop.f32.mrf.mxu0
    %v639 = vpop.f32.mrf.mxu0
    %v640 = vadd.f32 %v448, %v639
    %v641 = vpop.f32.mrf.mxu0
    %642 = vmatprep.mubr.bf16.mxu0 %v481
    %643 = vmatmul.mubr.bf16.gmra.mxu0 %v480
    %v644 = vpop.f32.mrf.mxu0
    %v645 = vadd.f32 %v448, %v644
    %v646 = vpop.f32.mrf.mxu0
    %v647 = vpop.f32.mrf.mxu0
    %v648 = vadd.f32 %v448, %v647
    %v649 = vpop.f32.mrf.mxu0
    %650 = vdwg.mxu0
    %v651 = vmax.f32 %v621, 0.0
    %v652 = vmax.f32 %v624, 0.0
    %v653 = vmax.f32 %v629, 0.0
    %v654 = vmax.f32 %v632, 0.0
    %v655 = vmax.f32 %v637, 0.0
    %v656 = vmax.f32 %v640, 0.0
    %v657 = vmax.f32 %v645, 0.0
    %v658 = vmax.f32 %v648, 0.0
    %v659 = vpack.c.bf16 %v652, %v651
    %v660 = vpack.c.bf16 %v654, %v653
    %v661 = vpack.c.bf16 %v656, %v655
    %v662 = vpack.c.bf16 %v658, %v657
    %v663 = vrot.slane %v651, 7
    %v664 = vrot.slane %v652, 7
    %v665 = vrot.slane %v653, 7
    %v666 = vrot.slane %v654, 7
    %v667 = vrot.slane %v655, 7
    %v668 = vrot.slane %v656, 7
    %v669 = vrot.slane %v657, 7
    %v670 = vrot.slane %v658, 7
    %v671 = vsel %vm286, %v669, %v670
    %v672 = vsel %vm286, %v668, %v669
    %v673 = vsel %vm286, %v667, %v668
    %v674 = vsel %vm286, %v666, %v667
    %v675 = vsel %vm286, %v665, %v666
    %v676 = vsel %vm286, %v664, %v665
    %v677 = vsel %vm286, %v663, %v664
    %v678 = vsel %vm286, %v670, %v663
    %v679 = vsel %vm311, %v678, 0.0
    %v680 = vsel %vm312, %v677, 0.0
    %v681 = vsel %vm313, %v676, 0.0
    %v682 = vsel %vm314, %v675, 0.0
    %v683 = vsel %vm315, %v674, 0.0
    %v684 = vsel %vm316, %v673, 0.0
    %v685 = vsel %vm317, %v672, 0.0
    %v686 = vsel %vm318, %v671, 0.0
    %v687 = vpack.c.bf16 %v680, %v679
    %v688 = vpack.c.bf16 %v682, %v681
    %v689 = vpack.c.bf16 %v684, %v683
    %v690 = vpack.c.bf16 %v686, %v685
    %v695 = vunpack.c.l.b16 %v687
    %v696 = vunpack.c.h.b16 %v687
    %v697 = vunpack.c.l.b16 %v688
    %v698 = vunpack.c.h.b16 %v688
    %v699 = vunpack.c.l.b16 %v689
    %v700 = vunpack.c.h.b16 %v689
    %v701 = vunpack.c.l.b16 %v690
    %v702 = vunpack.c.h.b16 %v690
    %v703 = vpack.c.b16 %v695, %v695
    %v704 = vpack.c.b16 %v696, %v696
    %v705 = vpack.c.b16 %v697, %v697
    %v706 = vpack.c.b16 %v698, %v698
    %v707 = vpack.c.b16 %v699, %v699
    %v708 = vpack.c.b16 %v700, %v700
    %v709 = vpack.c.b16 %v701, %v701
    %v710 = vpack.c.b16 %v702, %v702
    %719 = vst [vmem:[#allocation2] sm:$0xf] %v703
    %720 = vst [vmem:[#allocation2 + $0x8] sm:$0xf] %v704
    %721 = vst [vmem:[#allocation2 + $0x10] sm:$0xf] %v705
    %722 = vst [vmem:[#allocation2 + $0x18] sm:$0xf] %v706
    %723 = vst [vmem:[#allocation2 + $0x20] sm:$0xf] %v707
    %724 = vst [vmem:[#allocation2 + $0x28] sm:$0xf] %v708
    %725 = vst [vmem:[#allocation2 + $0x30] sm:$0xf] %v709
    %726 = vst [vmem:[#allocation2 + $0x38] sm:$0xf] %v710
    %v731 = vunpack.c.l.b16 %v659
    %v732 = vunpack.c.h.b16 %v659
    %v733 = vunpack.c.l.b16 %v660
    %v734 = vunpack.c.h.b16 %v660
    %v735 = vunpack.c.l.b16 %v661
    %v736 = vunpack.c.h.b16 %v661
    %v737 = vunpack.c.l.b16 %v662
    %v738 = vunpack.c.h.b16 %v662
    %v739 = vpack.c.b16 %v731, %v731
    %v740 = vpack.c.b16 %v732, %v732
    %v741 = vpack.c.b16 %v733, %v733
    %v742 = vpack.c.b16 %v734, %v734
    %v743 = vpack.c.b16 %v735, %v735
    %v744 = vpack.c.b16 %v736, %v736
    %v745 = vpack.c.b16 %v737, %v737
    %v746 = vpack.c.b16 %v738, %v738
    %755 = vst [vmem:[#allocation2 + $0x4] sm:$0xf] %v739
    %756 = vst [vmem:[#allocation2 + $0xc] sm:$0xf] %v740
    %757 = vst [vmem:[#allocation2 + $0x14] sm:$0xf] %v741
    %758 = vst [vmem:[#allocation2 + $0x1c] sm:$0xf] %v742
    %759 = vst [vmem:[#allocation2 + $0x24] sm:$0xf] %v743
    %760 = vst [vmem:[#allocation2 + $0x2c] sm:$0xf] %v744
    %761 = vst [vmem:[#allocation2 + $0x34] sm:$0xf] %v745
    %762 = vst [vmem:[#allocation2 + $0x3c] sm:$0xf] %v746
    %v763 = vld [vmem:[#allocation2] sm:$0xff]
    %v764 = vld [vmem:[#allocation2 + $0x8] sm:$0xff]
    %v765 = vld [vmem:[#allocation2 + $0x10] sm:$0xff]
    %v766 = vld [vmem:[#allocation2 + $0x18] sm:$0xff]
    %v767 = vld [vmem:[#allocation2 + $0x20] sm:$0xff]
    %v768 = vld [vmem:[#allocation2 + $0x28] sm:$0xff]
    %v769 = vld [vmem:[#allocation2 + $0x30] sm:$0xff]
    %v770 = vld [vmem:[#allocation2 + $0x38] sm:$0xff]
    %v771 = vld [vmem:[#allocation8] sm:$0xf]
    %v772 = vld [vmem:[#allocation8 + $0x4] sm:$0xf]
    %v773 = vld [vmem:[#allocation8 + $0x8] sm:$0xf]
    %v774 = vld [vmem:[#allocation8 + $0xc] sm:$0xf]
    %v775 = vld [vmem:[#allocation8 + $0x10] sm:$0xf]
    %v776 = vld [vmem:[#allocation8 + $0x14] sm:$0xf]
    %v777 = vld [vmem:[#allocation8 + $0x18] sm:$0xf]
    %v778 = vld [vmem:[#allocation8 + $0x1c] sm:$0xf]
    %v779 = vld [vmem:[#allocation8 + $0x20] sm:$0xf]
    %v780 = vld [vmem:[#allocation8 + $0x24] sm:$0xf]
    %v781 = vld [vmem:[#allocation8 + $0x28] sm:$0xf]
    %v782 = vld [vmem:[#allocation8 + $0x2c] sm:$0xf]
    %v783 = vld [vmem:[#allocation8 + $0x30] sm:$0xf]
    %v784 = vld [vmem:[#allocation8 + $0x34] sm:$0xf]
    %v785 = vld [vmem:[#allocation8 + $0x38] sm:$0xf]
    %v786 = vld [vmem:[#allocation8 + $0x3c] sm:$0xf]
    %v787 = vld [vmem:[#allocation8 + $0x40] sm:$0xf]
    %v788 = vld [vmem:[#allocation8 + $0x44] sm:$0xf]
    %v789 = vld [vmem:[#allocation8 + $0x48] sm:$0xf]
    %v790 = vld [vmem:[#allocation8 + $0x4c] sm:$0xf]
    %v791 = vld [vmem:[#allocation8 + $0x50] sm:$0xf]
    %v792 = vld [vmem:[#allocation8 + $0x54] sm:$0xf]
    %v793 = vld [vmem:[#allocation8 + $0x58] sm:$0xf]
    %v794 = vld [vmem:[#allocation8 + $0x5c] sm:$0xf]
    %v795 = vld [vmem:[#allocation8 + $0x60] sm:$0xf]
    %v796 = vld [vmem:[#allocation8 + $0x64] sm:$0xf]
    %v797 = vld [vmem:[#allocation8 + $0x68] sm:$0xf]
    %v798 = vld [vmem:[#allocation8 + $0x6c] sm:$0xf]
    %v799 = vld [vmem:[#allocation8 + $0x70] sm:$0xf]
    %v800 = vld [vmem:[#allocation8 + $0x74] sm:$0xf]
    %v801 = vld [vmem:[#allocation8 + $0x78] sm:$0xf]
    %v802 = vld [vmem:[#allocation8 + $0x7c] sm:$0xf]
    %v803 = vld [vmem:[%s4] sm:$0x1]
    %v805 = vlaneseq
    %v806 = vshrl.u32 %v805, 7
    %v807 = vsub.s32 0, %v806
    %v808 = vrot.slane %v803, %v807
    %v818 = vunpack.c.l.b16 %v763
    %v819 = vunpack.c.h.b16 %v763
    %v820 = vunpack.c.l.b16 %v764
    %v821 = vunpack.c.h.b16 %v764
    %v822 = vunpack.c.l.b16 %v765
    %v823 = vunpack.c.h.b16 %v765
    %v824 = vunpack.c.l.b16 %v766
    %v825 = vunpack.c.h.b16 %v766
    %v826 = vunpack.c.l.b16 %v767
    %v827 = vunpack.c.h.b16 %v767
    %v828 = vunpack.c.l.b16 %v768
    %v829 = vunpack.c.h.b16 %v768
    %v830 = vunpack.c.l.b16 %v769
    %v831 = vunpack.c.h.b16 %v769
    %v832 = vunpack.c.l.b16 %v770
    %v833 = vunpack.c.h.b16 %v770
    %v834 = vpack.c.b16 %v820, %v818
    %v835 = vpack.c.b16 %v821, %v819
    %v836 = vpack.c.b16 %v824, %v822
    %v837 = vpack.c.b16 %v825, %v823
    %v838 = vpack.c.b16 %v828, %v826
    %v839 = vpack.c.b16 %v829, %v827
    %v840 = vpack.c.b16 %v832, %v830
    %v841 = vpack.c.b16 %v833, %v831
    %v882 = vunpack.c.l.b16 %v771
    %v883 = vunpack.c.l.b16 %v772
    %v884 = vunpack.c.l.b16 %v773
    %v885 = vunpack.c.l.b16 %v774
    %v886 = vunpack.c.l.b16 %v775
    %v887 = vunpack.c.l.b16 %v776
    %v888 = vunpack.c.l.b16 %v777
    %v889 = vunpack.c.l.b16 %v778
    %v890 = vunpack.c.l.b16 %v779
    %v891 = vunpack.c.l.b16 %v780
    %v892 = vunpack.c.l.b16 %v781
    %v893 = vunpack.c.l.b16 %v782
    %v894 = vunpack.c.l.b16 %v783
    %v895 = vunpack.c.l.b16 %v784
    %v896 = vunpack.c.l.b16 %v785
    %v897 = vunpack.c.l.b16 %v786
    %v898 = vunpack.c.l.b16 %v787
    %v899 = vunpack.c.l.b16 %v788
    %v900 = vunpack.c.l.b16 %v789
    %v901 = vunpack.c.l.b16 %v790
    %v902 = vunpack.c.l.b16 %v791
    %v903 = vunpack.c.l.b16 %v792
    %v904 = vunpack.c.l.b16 %v793
    %v905 = vunpack.c.l.b16 %v794
    %v906 = vunpack.c.l.b16 %v795
    %v907 = vunpack.c.l.b16 %v796
    %v908 = vunpack.c.l.b16 %v797
    %v909 = vunpack.c.l.b16 %v798
    %v910 = vunpack.c.l.b16 %v799
    %v911 = vunpack.c.l.b16 %v800
    %v912 = vunpack.c.l.b16 %v801
    %v913 = vunpack.c.l.b16 %v802
    %v914 = vpack.c.b16 %v883, %v882
    %v915 = vpack.c.b16 %v885, %v884
    %v916 = vpack.c.b16 %v887, %v886
    %v917 = vpack.c.b16 %v889, %v888
    %v918 = vpack.c.b16 %v891, %v890
    %v919 = vpack.c.b16 %v893, %v892
    %v920 = vpack.c.b16 %v895, %v894
    %v921 = vpack.c.b16 %v897, %v896
    %v922 = vpack.c.b16 %v899, %v898
    %v923 = vpack.c.b16 %v901, %v900
    %v924 = vpack.c.b16 %v903, %v902
    %v925 = vpack.c.b16 %v905, %v904
    %v926 = vpack.c.b16 %v907, %v906
    %v927 = vpack.c.b16 %v909, %v908
    %v928 = vpack.c.b16 %v911, %v910
    %v929 = vpack.c.b16 %v913, %v912
    %946 = vmatprep.subr.bf16.mxu0 0
    %947 = vmatpush1.bf16.msra.mxu0 %v921
    %948 = vmatprep.subr.bf16.mxu0 0
    %949 = vmatpush1.bf16.msra.mxu0 %v920
    %950 = vmatprep.subr.bf16.mxu0 0
    %951 = vmatpush1.bf16.msra.mxu0 %v919
    %952 = vmatprep.subr.bf16.mxu0 0
    %953 = vmatpush1.bf16.msra.mxu0 %v918
    %954 = vmatprep.subr.bf16.mxu0 0
    %955 = vmatpush1.bf16.msra.mxu0 %v917
    %956 = vmatprep.subr.bf16.mxu0 0
    %957 = vmatpush1.bf16.msra.mxu0 %v916
    %958 = vmatprep.subr.bf16.mxu0 0
    %959 = vmatpush1.bf16.msra.mxu0 %v915
    %960 = vmatprep.subr.bf16.mxu0 0
    %961 = vmatpush1.bf16.msra.mxu0 %v914
    %962 = vmatprep.subr.bf16.mxu0 0
    %963 = vmatpush2.bf16.msra.mxu0 %v929
    %964 = vmatprep.subr.bf16.mxu0 0
    %965 = vmatpush2.bf16.msra.mxu0 %v928
    %966 = vmatprep.subr.bf16.mxu0 0
    %967 = vmatpush2.bf16.msra.mxu0 %v927
    %968 = vmatprep.subr.bf16.mxu0 0
    %969 = vmatpush2.bf16.msra.mxu0 %v926
    %970 = vmatprep.subr.bf16.mxu0 0
    %971 = vmatpush2.bf16.msra.mxu0 %v925
    %972 = vmatprep.subr.bf16.mxu0 0
    %973 = vmatpush2.bf16.msra.mxu0 %v924
    %974 = vmatprep.subr.bf16.mxu0 0
    %975 = vmatpush2.bf16.msra.mxu0 %v923
    %976 = vmatprep.subr.bf16.mxu0 0
    %977 = vmatpush2.bf16.msra.mxu0 %v922
    %978 = vmatprep.mubr.bf16.mxu0 %v835
    %979 = vmatmul.mubr.bf16.gmra.mxu0 %v834
    %v980 = vpop.f32.mrf.mxu0
    %v981 = vadd.f32 %v808, %v980
    %v982 = vpop.f32.mrf.mxu0
    %v983 = vpop.f32.mrf.mxu0
    %v984 = vadd.f32 %v808, %v983
    %v985 = vpop.f32.mrf.mxu0
    %986 = vmatprep.mubr.bf16.mxu0 %v837
    %987 = vmatmul.mubr.bf16.gmra.mxu0 %v836
    %v988 = vpop.f32.mrf.mxu0
    %v989 = vadd.f32 %v808, %v988
    %v990 = vpop.f32.mrf.mxu0
    %v991 = vpop.f32.mrf.mxu0
    %v992 = vadd.f32 %v808, %v991
    %v993 = vpop.f32.mrf.mxu0
    %994 = vmatprep.mubr.bf16.mxu0 %v839
    %995 = vmatmul.mubr.bf16.gmra.mxu0 %v838
    %v996 = vpop.f32.mrf.mxu0
    %v997 = vadd.f32 %v808, %v996
    %v998 = vpop.f32.mrf.mxu0
    %v999 = vpop.f32.mrf.mxu0
    %v1000 = vadd.f32 %v808, %v999
    %v1001 = vpop.f32.mrf.mxu0
    %1002 = vmatprep.mubr.bf16.mxu0 %v841
    %1003 = vmatmul.mubr.bf16.gmra.mxu0 %v840
    %v1004 = vpop.f32.mrf.mxu0
    %v1005 = vadd.f32 %v808, %v1004
    %v1006 = vpop.f32.mrf.mxu0
    %v1007 = vpop.f32.mrf.mxu0
    %v1008 = vadd.f32 %v808, %v1007
    %v1009 = vpop.f32.mrf.mxu0
    %1010 = vdwg.mxu0
    %v1011 = vmax.f32 %v981, 0.0
    %v1012 = vmax.f32 %v984, 0.0
    %v1013 = vmax.f32 %v989, 0.0
    %v1014 = vmax.f32 %v992, 0.0
    %v1015 = vmax.f32 %v997, 0.0
    %v1016 = vmax.f32 %v1000, 0.0
    %v1017 = vmax.f32 %v1005, 0.0
    %v1018 = vmax.f32 %v1008, 0.0
    %v1019 = vld [vmem:[#allocation9] sm:$0xf]
    %v1020 = vld [vmem:[#allocation9 + $0x4] sm:$0xf]
    %v1021 = vld [vmem:[#allocation9 + $0x8] sm:$0xf]
    %v1022 = vld [vmem:[#allocation9 + $0xc] sm:$0xf]
    %v1023 = vld [vmem:[#allocation9 + $0x10] sm:$0xf]
    %v1024 = vld [vmem:[#allocation9 + $0x14] sm:$0xf]
    %v1025 = vld [vmem:[#allocation9 + $0x18] sm:$0xf]
    %v1026 = vld [vmem:[#allocation9 + $0x1c] sm:$0xf]
    %v1027 = vld [vmem:[#allocation9 + $0x20] sm:$0xf]
    %v1028 = vld [vmem:[#allocation9 + $0x24] sm:$0xf]
    %v1029 = vld [vmem:[#allocation9 + $0x28] sm:$0xf]
    %v1030 = vld [vmem:[#allocation9 + $0x2c] sm:$0xf]
    %v1031 = vld [vmem:[#allocation9 + $0x30] sm:$0xf]
    %v1032 = vld [vmem:[#allocation9 + $0x34] sm:$0xf]
    %v1033 = vld [vmem:[#allocation9 + $0x38] sm:$0xf]
    %v1034 = vld [vmem:[#allocation9 + $0x3c] sm:$0xf]
    %v1035 = vld [vmem:[%s6] sm:$0x1]
    %v1037 = vlaneseq
    %v1038 = vshrl.u32 %v1037, 7
    %v1039 = vsub.s32 0, %v1038
    %v1040 = vrot.slane %v1035, %v1039
    %v1058 = vunpack.c.l.b16 %v1019
    %v1059 = vunpack.c.l.b16 %v1020
    %v1060 = vunpack.c.l.b16 %v1021
    %v1061 = vunpack.c.l.b16 %v1022
    %v1062 = vunpack.c.l.b16 %v1023
    %v1063 = vunpack.c.l.b16 %v1024
    %v1064 = vunpack.c.l.b16 %v1025
    %v1065 = vunpack.c.l.b16 %v1026
    %v1066 = vunpack.c.l.b16 %v1027
    %v1067 = vunpack.c.l.b16 %v1028
    %v1068 = vunpack.c.l.b16 %v1029
    %v1069 = vunpack.c.l.b16 %v1030
    %v1070 = vunpack.c.l.b16 %v1031
    %v1071 = vunpack.c.l.b16 %v1032
    %v1072 = vunpack.c.l.b16 %v1033
    %v1073 = vunpack.c.l.b16 %v1034
    %v1074 = vpack.c.b16 %v1059, %v1058
    %v1075 = vpack.c.b16 %v1061, %v1060
    %v1076 = vpack.c.b16 %v1063, %v1062
    %v1077 = vpack.c.b16 %v1065, %v1064
    %v1078 = vpack.c.b16 %v1067, %v1066
    %v1079 = vpack.c.b16 %v1069, %v1068
    %v1080 = vpack.c.b16 %v1071, %v1070
    %v1081 = vpack.c.b16 %v1073, %v1072
    %1090 = vmatprep.subr.bf16.mxu0 0
    %1091 = vmatpush1.bf16.msra.mxu0 %v1081
    %1092 = vmatprep.subr.bf16.mxu0 0
    %1093 = vmatpush1.bf16.msra.mxu0 %v1080
    %1094 = vmatprep.subr.bf16.mxu0 0
    %1095 = vmatpush1.bf16.msra.mxu0 %v1079
    %1096 = vmatprep.subr.bf16.mxu0 0
    %1097 = vmatpush1.bf16.msra.mxu0 %v1078
    %1098 = vmatprep.subr.bf16.mxu0 0
    %1099 = vmatpush1.bf16.msra.mxu0 %v1077
    %1100 = vmatprep.subr.bf16.mxu0 0
    %1101 = vmatpush1.bf16.msra.mxu0 %v1076
    %1102 = vmatprep.subr.bf16.mxu0 0
    %1103 = vmatpush1.bf16.msra.mxu0 %v1075
    %1104 = vmatprep.subr.bf16.mxu0 0
    %1105 = vmatpush1.bf16.msra.mxu0 %v1074
    %1106 = vmatprep.subr.bf16.mxu0 0
    %1107 = vmatpush2.bf16.msra.mxu0 0
    %1108 = vmatprep.subr.bf16.mxu0 0
    %1109 = vmatpush2.bf16.msra.mxu0 0
    %1110 = vmatprep.subr.bf16.mxu0 0
    %1111 = vmatpush2.bf16.msra.mxu0 0
    %1112 = vmatprep.subr.bf16.mxu0 0
    %1113 = vmatpush2.bf16.msra.mxu0 0
    %1114 = vmatprep.subr.bf16.mxu0 0
    %1115 = vmatpush2.bf16.msra.mxu0 0
    %1116 = vmatprep.subr.bf16.mxu0 0
    %1117 = vmatpush2.bf16.msra.mxu0 0
    %1118 = vmatprep.subr.bf16.mxu0 0
    %1119 = vmatpush2.bf16.msra.mxu0 0
    %1120 = vmatprep.subr.bf16.mxu0 0
    %1121 = vmatpush2.bf16.msra.mxu0 0
    %1122 = vmatprep.mubr.bf16.mxu0 0
    %1123 = vmatmul.mubr.bf16.gmra.mxu0 %v274
    %v1124 = vpop.f32.mrf.mxu0
    %v1125 = vadd.f32 %v1040, %v1124
    %v1126 = vpop.f32.mrf.mxu0
    %v1127 = vpop.f32.mrf.mxu0
    %v1128 = vadd.f32 %v1040, %v1127
    %v1129 = vpop.f32.mrf.mxu0
    %1130 = vmatprep.mubr.bf16.mxu0 0
    %1131 = vmatmul.mubr.bf16.gmra.mxu0 %v275
    %v1132 = vpop.f32.mrf.mxu0
    %v1133 = vadd.f32 %v1040, %v1132
    %v1134 = vpop.f32.mrf.mxu0
    %v1135 = vpop.f32.mrf.mxu0
    %v1136 = vadd.f32 %v1040, %v1135
    %v1137 = vpop.f32.mrf.mxu0
    %1138 = vmatprep.mubr.bf16.mxu0 0
    %1139 = vmatmul.mubr.bf16.gmra.mxu0 %v276
    %v1140 = vpop.f32.mrf.mxu0
    %v1141 = vadd.f32 %v1040, %v1140
    %v1142 = vpop.f32.mrf.mxu0
    %v1143 = vpop.f32.mrf.mxu0
    %v1144 = vadd.f32 %v1040, %v1143
    %v1145 = vpop.f32.mrf.mxu0
    %1146 = vmatprep.mubr.bf16.mxu0 0
    %1147 = vmatmul.mubr.bf16.gmra.mxu0 %v277
    %v1148 = vpop.f32.mrf.mxu0
    %v1149 = vadd.f32 %v1040, %v1148
    %v1150 = vpop.f32.mrf.mxu0
    %v1151 = vpop.f32.mrf.mxu0
    %v1152 = vadd.f32 %v1040, %v1151
    %v1153 = vpop.f32.mrf.mxu0
    %1154 = vdwg.mxu0
    %v1155 = vadd.f32 %v1011, %v1125
    %v1156 = vadd.f32 %v1012, %v1128
    %v1157 = vadd.f32 %v1013, %v1133
    %v1158 = vadd.f32 %v1014, %v1136
    %v1159 = vadd.f32 %v1015, %v1141
    %v1160 = vadd.f32 %v1016, %v1144
    %v1161 = vadd.f32 %v1017, %v1149
    %v1162 = vadd.f32 %v1018, %v1152
    %v1163 = vmax.f32 %v1155, 0.0
    %v1164 = vmax.f32 %v1156, 0.0
    %v1165 = vmax.f32 %v1157, 0.0
    %v1166 = vmax.f32 %v1158, 0.0
    %v1167 = vmax.f32 %v1159, 0.0
    %v1168 = vmax.f32 %v1160, 0.0
    %v1169 = vmax.f32 %v1161, 0.0
    %v1170 = vmax.f32 %v1162, 0.0
    %v1171 = vpack.c.bf16 %v1164, %v1163
    %v1172 = vpack.c.bf16 %v1166, %v1165
    %v1173 = vpack.c.bf16 %v1168, %v1167
    %v1174 = vpack.c.bf16 %v1170, %v1169
    %v1175 = vrot.slane %v1163, 6
    %v1176 = vrot.slane %v1164, 6
    %v1177 = vrot.slane %v1165, 6
    %v1178 = vrot.slane %v1166, 6
    %v1179 = vrot.slane %v1167, 6
    %v1180 = vrot.slane %v1168, 6
    %v1181 = vrot.slane %v1169, 6
    %v1182 = vrot.slane %v1170, 6
    %vm1183 = vcmp.lt.s32.totalorder %v162, 2
    %v1184 = vsel %vm1183, %v1181, %v1182
    %v1185 = vsel %vm1183, %v1180, %v1181
    %v1186 = vsel %vm1183, %v1179, %v1180
    %v1187 = vsel %vm1183, %v1178, %v1179
    %v1188 = vsel %vm1183, %v1177, %v1178
    %v1189 = vsel %vm1183, %v1176, %v1177
    %v1190 = vsel %vm1183, %v1175, %v1176
    %v1191 = vsel %vm1183, %v1182, %v1175
    %vm1192 = vcmp.ge.s32.totalorder %v258, 2
    %vm1193 = vcmp.ge.s32.totalorder %v259, 2
    %vm1194 = vcmp.ge.s32.totalorder %v260, 2
    %vm1195 = vcmp.ge.s32.totalorder %v261, 2
    %vm1196 = vcmp.ge.s32.totalorder %v262, 2
    %vm1197 = vcmp.ge.s32.totalorder %v263, 2
    %vm1198 = vcmp.ge.s32.totalorder %v264, 2
    %vm1199 = vcmp.ge.s32.totalorder %v265, 2
    %v1200 = vsel %vm1192, 1, 0
    %v1201 = vsel %vm1193, 1, 0
    %v1202 = vsel %vm1194, 1, 0
    %v1203 = vsel %vm1195, 1, 0
    %v1204 = vsel %vm1196, 1, 0
    %v1205 = vsel %vm1197, 1, 0
    %v1206 = vsel %vm1198, 1, 0
    %v1207 = vsel %vm1199, 1, 0
    %vm1208 = vcmp.eq.s32.totalorder %v1200, 1
    %vm1209 = vcmp.eq.s32.totalorder %v1201, 1
    %vm1210 = vcmp.eq.s32.totalorder %v1202, 1
    %vm1211 = vcmp.eq.s32.totalorder %v1203, 1
    %vm1212 = vcmp.eq.s32.totalorder %v1204, 1
    %vm1213 = vcmp.eq.s32.totalorder %v1205, 1
    %vm1214 = vcmp.eq.s32.totalorder %v1206, 1
    %vm1215 = vcmp.eq.s32.totalorder %v1207, 1
    %v1216 = vsel %vm1208, %v1191, 0.0
    %v1217 = vsel %vm1209, %v1190, 0.0
    %v1218 = vsel %vm1210, %v1189, 0.0
    %v1219 = vsel %vm1211, %v1188, 0.0
    %v1220 = vsel %vm1212, %v1187, 0.0
    %v1221 = vsel %vm1213, %v1186, 0.0
    %v1222 = vsel %vm1214, %v1185, 0.0
    %v1223 = vsel %vm1215, %v1184, 0.0
    %v1224 = vpack.c.bf16 %v1217, %v1216
    %v1225 = vpack.c.bf16 %v1219, %v1218
    %v1226 = vpack.c.bf16 %v1221, %v1220
    %v1227 = vpack.c.bf16 %v1223, %v1222
    %v1232 = vunpack.c.l.b16 %v1224
    %v1233 = vunpack.c.h.b16 %v1224
    %v1234 = vunpack.c.l.b16 %v1225
    %v1235 = vunpack.c.h.b16 %v1225
    %v1236 = vunpack.c.l.b16 %v1226
    %v1237 = vunpack.c.h.b16 %v1226
    %v1238 = vunpack.c.l.b16 %v1227
    %v1239 = vunpack.c.h.b16 %v1227
    %v1240 = vpack.c.b16 %v1232, %v1232
    %v1241 = vpack.c.b16 %v1233, %v1233
    %v1242 = vpack.c.b16 %v1234, %v1234
    %v1243 = vpack.c.b16 %v1235, %v1235
    %v1244 = vpack.c.b16 %v1236, %v1236
    %v1245 = vpack.c.b16 %v1237, %v1237
    %v1246 = vpack.c.b16 %v1238, %v1238
    %v1247 = vpack.c.b16 %v1239, %v1239
    %1256 = vst [vmem:[#allocation2] sm:$0xf] %v1240
    %1257 = vst [vmem:[#allocation2 + $0x8] sm:$0xf] %v1241
    %1258 = vst [vmem:[#allocation2 + $0x10] sm:$0xf] %v1242
    %1259 = vst [vmem:[#allocation2 + $0x18] sm:$0xf] %v1243
    %1260 = vst [vmem:[#allocation2 + $0x20] sm:$0xf] %v1244
    %1261 = vst [vmem:[#allocation2 + $0x28] sm:$0xf] %v1245
    %1262 = vst [vmem:[#allocation2 + $0x30] sm:$0xf] %v1246
    %1263 = vst [vmem:[#allocation2 + $0x38] sm:$0xf] %v1247
    %v1268 = vunpack.c.l.b16 %v1171
    %v1269 = vunpack.c.h.b16 %v1171
    %v1270 = vunpack.c.l.b16 %v1172
    %v1271 = vunpack.c.h.b16 %v1172
    %v1272 = vunpack.c.l.b16 %v1173
    %v1273 = vunpack.c.h.b16 %v1173
    %v1274 = vunpack.c.l.b16 %v1174
    %v1275 = vunpack.c.h.b16 %v1174
    %v1276 = vpack.c.b16 %v1268, %v1268
    %v1277 = vpack.c.b16 %v1269, %v1269
    %v1278 = vpack.c.b16 %v1270, %v1270
    %v1279 = vpack.c.b16 %v1271, %v1271
    %v1280 = vpack.c.b16 %v1272, %v1272
    %v1281 = vpack.c.b16 %v1273, %v1273
    %v1282 = vpack.c.b16 %v1274, %v1274
    %v1283 = vpack.c.b16 %v1275, %v1275
    %1292 = vst [vmem:[#allocation2 + $0x4] sm:$0xf] %v1276
    %1293 = vst [vmem:[#allocation2 + $0xc] sm:$0xf] %v1277
    %1294 = vst [vmem:[#allocation2 + $0x14] sm:$0xf] %v1278
    %1295 = vst [vmem:[#allocation2 + $0x1c] sm:$0xf] %v1279
    %1296 = vst [vmem:[#allocation2 + $0x24] sm:$0xf] %v1280
    %1297 = vst [vmem:[#allocation2 + $0x2c] sm:$0xf] %v1281
    %1298 = vst [vmem:[#allocation2 + $0x34] sm:$0xf] %v1282
    %1299 = vst [vmem:[#allocation2 + $0x3c] sm:$0xf] %v1283
    %v1300 = vld [vmem:[#allocation2] sm:$0xff]
    %v1301 = vld [vmem:[#allocation2 + $0x8] sm:$0xff]
    %v1302 = vld [vmem:[#allocation2 + $0x10] sm:$0xff]
    %v1303 = vld [vmem:[#allocation2 + $0x18] sm:$0xff]
    %v1304 = vld [vmem:[#allocation2 + $0x20] sm:$0xff]
    %v1305 = vld [vmem:[#allocation2 + $0x28] sm:$0xff]
    %v1306 = vld [vmem:[#allocation2 + $0x30] sm:$0xff]
    %v1307 = vld [vmem:[#allocation2 + $0x38] sm:$0xff]
    %v1308 = vld [vmem:[#allocation11] sm:$0xf]
    %v1309 = vld [vmem:[#allocation11 + $0x4] sm:$0xf]
    %v1310 = vld [vmem:[#allocation11 + $0x8] sm:$0xf]
    %v1311 = vld [vmem:[#allocation11 + $0xc] sm:$0xf]
    %v1312 = vld [vmem:[#allocation11 + $0x10] sm:$0xf]
    %v1313 = vld [vmem:[#allocation11 + $0x14] sm:$0xf]
    %v1314 = vld [vmem:[#allocation11 + $0x18] sm:$0xf]
    %v1315 = vld [vmem:[#allocation11 + $0x1c] sm:$0xf]
    %v1316 = vld [vmem:[#allocation11 + $0x20] sm:$0xf]
    %v1317 = vld [vmem:[#allocation11 + $0x24] sm:$0xf]
    %v1318 = vld [vmem:[#allocation11 + $0x28] sm:$0xf]
    %v1319 = vld [vmem:[#allocation11 + $0x2c] sm:$0xf]
    %v1320 = vld [vmem:[#allocation11 + $0x30] sm:$0xf]
    %v1321 = vld [vmem:[#allocation11 + $0x34] sm:$0xf]
    %v1322 = vld [vmem:[#allocation11 + $0x38] sm:$0xf]
    %v1323 = vld [vmem:[#allocation11 + $0x3c] sm:$0xf]
    %v1324 = vld [vmem:[#allocation11 + $0x40] sm:$0xf]
    %v1325 = vld [vmem:[#allocation11 + $0x44] sm:$0xf]
    %v1326 = vld [vmem:[#allocation11 + $0x48] sm:$0xf]
    %v1327 = vld [vmem:[#allocation11 + $0x4c] sm:$0xf]
    %v1328 = vld [vmem:[#allocation11 + $0x50] sm:$0xf]
    %v1329 = vld [vmem:[#allocation11 + $0x54] sm:$0xf]
    %v1330 = vld [vmem:[#allocation11 + $0x58] sm:$0xf]
    %v1331 = vld [vmem:[#allocation11 + $0x5c] sm:$0xf]
    %v1332 = vld [vmem:[#allocation11 + $0x60] sm:$0xf]
    %v1333 = vld [vmem:[#allocation11 + $0x64] sm:$0xf]
    %v1334 = vld [vmem:[#allocation11 + $0x68] sm:$0xf]
    %v1335 = vld [vmem:[#allocation11 + $0x6c] sm:$0xf]
    %v1336 = vld [vmem:[#allocation11 + $0x70] sm:$0xf]
    %v1337 = vld [vmem:[#allocation11 + $0x74] sm:$0xf]
    %v1338 = vld [vmem:[#allocation11 + $0x78] sm:$0xf]
    %v1339 = vld [vmem:[#allocation11 + $0x7c] sm:$0xf]
    %v1340 = vld [vmem:[%s8] sm:$0x1]
    %v1342 = vlaneseq
    %v1343 = vshrl.u32 %v1342, 7
    %v1344 = vsub.s32 0, %v1343
    %v1345 = vrot.slane %v1340, %v1344
    %v1355 = vunpack.c.l.b16 %v1300
    %v1356 = vunpack.c.h.b16 %v1300
    %v1357 = vunpack.c.l.b16 %v1301
    %v1358 = vunpack.c.h.b16 %v1301
    %v1359 = vunpack.c.l.b16 %v1302
    %v1360 = vunpack.c.h.b16 %v1302
    %v1361 = vunpack.c.l.b16 %v1303
    %v1362 = vunpack.c.h.b16 %v1303
    %v1363 = vunpack.c.l.b16 %v1304
    %v1364 = vunpack.c.h.b16 %v1304
    %v1365 = vunpack.c.l.b16 %v1305
    %v1366 = vunpack.c.h.b16 %v1305
    %v1367 = vunpack.c.l.b16 %v1306
    %v1368 = vunpack.c.h.b16 %v1306
    %v1369 = vunpack.c.l.b16 %v1307
    %v1370 = vunpack.c.h.b16 %v1307
    %v1371 = vpack.c.b16 %v1357, %v1355
    %v1372 = vpack.c.b16 %v1358, %v1356
    %v1373 = vpack.c.b16 %v1361, %v1359
    %v1374 = vpack.c.b16 %v1362, %v1360
    %v1375 = vpack.c.b16 %v1365, %v1363
    %v1376 = vpack.c.b16 %v1366, %v1364
    %v1377 = vpack.c.b16 %v1369, %v1367
    %v1378 = vpack.c.b16 %v1370, %v1368
    %v1419 = vunpack.c.l.b16 %v1308
    %v1420 = vunpack.c.l.b16 %v1309
    %v1421 = vunpack.c.l.b16 %v1310
    %v1422 = vunpack.c.l.b16 %v1311
    %v1423 = vunpack.c.l.b16 %v1312
    %v1424 = vunpack.c.l.b16 %v1313
    %v1425 = vunpack.c.l.b16 %v1314
    %v1426 = vunpack.c.l.b16 %v1315
    %v1427 = vunpack.c.l.b16 %v1316
    %v1428 = vunpack.c.l.b16 %v1317
    %v1429 = vunpack.c.l.b16 %v1318
    %v1430 = vunpack.c.l.b16 %v1319
    %v1431 = vunpack.c.l.b16 %v1320
    %v1432 = vunpack.c.l.b16 %v1321
    %v1433 = vunpack.c.l.b16 %v1322
    %v1434 = vunpack.c.l.b16 %v1323
    %v1435 = vunpack.c.l.b16 %v1324
    %v1436 = vunpack.c.l.b16 %v1325
    %v1437 = vunpack.c.l.b16 %v1326
    %v1438 = vunpack.c.l.b16 %v1327
    %v1439 = vunpack.c.l.b16 %v1328
    %v1440 = vunpack.c.l.b16 %v1329
    %v1441 = vunpack.c.l.b16 %v1330
    %v1442 = vunpack.c.l.b16 %v1331
    %v1443 = vunpack.c.l.b16 %v1332
    %v1444 = vunpack.c.l.b16 %v1333
    %v1445 = vunpack.c.l.b16 %v1334
    %v1446 = vunpack.c.l.b16 %v1335
    %v1447 = vunpack.c.l.b16 %v1336
    %v1448 = vunpack.c.l.b16 %v1337
    %v1449 = vunpack.c.l.b16 %v1338
    %v1450 = vunpack.c.l.b16 %v1339
    %v1451 = vpack.c.b16 %v1420, %v1419
    %v1452 = vpack.c.b16 %v1422, %v1421
    %v1453 = vpack.c.b16 %v1424, %v1423
    %v1454 = vpack.c.b16 %v1426, %v1425
    %v1455 = vpack.c.b16 %v1428, %v1427
    %v1456 = vpack.c.b16 %v1430, %v1429
    %v1457 = vpack.c.b16 %v1432, %v1431
    %v1458 = vpack.c.b16 %v1434, %v1433
    %v1459 = vpack.c.b16 %v1436, %v1435
    %v1460 = vpack.c.b16 %v1438, %v1437
    %v1461 = vpack.c.b16 %v1440, %v1439
    %v1462 = vpack.c.b16 %v1442, %v1441
    %v1463 = vpack.c.b16 %v1444, %v1443
    %v1464 = vpack.c.b16 %v1446, %v1445
    %v1465 = vpack.c.b16 %v1448, %v1447
    %v1466 = vpack.c.b16 %v1450, %v1449
    %1483 = vmatprep.subr.bf16.mxu0 0
    %1484 = vmatpush1.bf16.msra.mxu0 %v1458
    %1485 = vmatprep.subr.bf16.mxu0 0
    %1486 = vmatpush1.bf16.msra.mxu0 %v1457
    %1487 = vmatprep.subr.bf16.mxu0 0
    %1488 = vmatpush1.bf16.msra.mxu0 %v1456
    %1489 = vmatprep.subr.bf16.mxu0 0
    %1490 = vmatpush1.bf16.msra.mxu0 %v1455
    %1491 = vmatprep.subr.bf16.mxu0 0
    %1492 = vmatpush1.bf16.msra.mxu0 %v1454
    %1493 = vmatprep.subr.bf16.mxu0 0
    %1494 = vmatpush1.bf16.msra.mxu0 %v1453
    %1495 = vmatprep.subr.bf16.mxu0 0
    %1496 = vmatpush1.bf16.msra.mxu0 %v1452
    %1497 = vmatprep.subr.bf16.mxu0 0
    %1498 = vmatpush1.bf16.msra.mxu0 %v1451
    %1499 = vmatprep.subr.bf16.mxu0 0
    %1500 = vmatpush2.bf16.msra.mxu0 %v1466
    %1501 = vmatprep.subr.bf16.mxu0 0
    %1502 = vmatpush2.bf16.msra.mxu0 %v1465
    %1503 = vmatprep.subr.bf16.mxu0 0
    %1504 = vmatpush2.bf16.msra.mxu0 %v1464
    %1505 = vmatprep.subr.bf16.mxu0 0
    %1506 = vmatpush2.bf16.msra.mxu0 %v1463
    %1507 = vmatprep.subr.bf16.mxu0 0
    %1508 = vmatpush2.bf16.msra.mxu0 %v1462
    %1509 = vmatprep.subr.bf16.mxu0 0
    %1510 = vmatpush2.bf16.msra.mxu0 %v1461
    %1511 = vmatprep.subr.bf16.mxu0 0
    %1512 = vmatpush2.bf16.msra.mxu0 %v1460
    %1513 = vmatprep.subr.bf16.mxu0 0
    %1514 = vmatpush2.bf16.msra.mxu0 %v1459
    %1515 = vmatprep.mubr.bf16.mxu0 %v1372
    %1516 = vmatmul.mubr.bf16.gmra.mxu0 %v1371
    %v1517 = vpop.f32.mrf.mxu0
    %v1518 = vadd.f32 %v1345, %v1517
    %v1519 = vpop.f32.mrf.mxu0
    %v1520 = vpop.f32.mrf.mxu0
    %v1521 = vadd.f32 %v1345, %v1520
    %v1522 = vpop.f32.mrf.mxu0
    %1523 = vmatprep.mubr.bf16.mxu0 %v1374
    %1524 = vmatmul.mubr.bf16.gmra.mxu0 %v1373
    %v1525 = vpop.f32.mrf.mxu0
    %v1526 = vadd.f32 %v1345, %v1525
    %v1527 = vpop.f32.mrf.mxu0
    %v1528 = vpop.f32.mrf.mxu0
    %v1529 = vadd.f32 %v1345, %v1528
    %v1530 = vpop.f32.mrf.mxu0
    %1531 = vmatprep.mubr.bf16.mxu0 %v1376
    %1532 = vmatmul.mubr.bf16.gmra.mxu0 %v1375
    %v1533 = vpop.f32.mrf.mxu0
    %v1534 = vadd.f32 %v1345, %v1533
    %v1535 = vpop.f32.mrf.mxu0
    %v1536 = vpop.f32.mrf.mxu0
    %v1537 = vadd.f32 %v1345, %v1536
    %v1538 = vpop.f32.mrf.mxu0
    %1539 = vmatprep.mubr.bf16.mxu0 %v1378
    %1540 = vmatmul.mubr.bf16.gmra.mxu0 %v1377
    %v1541 = vpop.f32.mrf.mxu0
    %v1542 = vadd.f32 %v1345, %v1541
    %v1543 = vpop.f32.mrf.mxu0
    %v1544 = vpop.f32.mrf.mxu0
    %v1545 = vadd.f32 %v1345, %v1544
    %v1546 = vpop.f32.mrf.mxu0
    %1547 = vdwg.mxu0
    %v1548 = vmax.f32 %v1518, 0.0
    %v1549 = vmax.f32 %v1521, 0.0
    %v1550 = vmax.f32 %v1526, 0.0
    %v1551 = vmax.f32 %v1529, 0.0
    %v1552 = vmax.f32 %v1534, 0.0
    %v1553 = vmax.f32 %v1537, 0.0
    %v1554 = vmax.f32 %v1542, 0.0
    %v1555 = vmax.f32 %v1545, 0.0
    %v1556 = vpack.c.bf16 %v1549, %v1548
    %v1557 = vpack.c.bf16 %v1551, %v1550
    %v1558 = vpack.c.bf16 %v1553, %v1552
    %v1559 = vpack.c.bf16 %v1555, %v1554
    %v1560 = vrot.slane %v1548, 6
    %v1561 = vrot.slane %v1549, 6
    %v1562 = vrot.slane %v1550, 6
    %v1563 = vrot.slane %v1551, 6
    %v1564 = vrot.slane %v1552, 6
    %v1565 = vrot.slane %v1553, 6
    %v1566 = vrot.slane %v1554, 6
    %v1567 = vrot.slane %v1555, 6
    %v1568 = vsel %vm1183, %v1566, %v1567
    %v1569 = vsel %vm1183, %v1565, %v1566
    %v1570 = vsel %vm1183, %v1564, %v1565
    %v1571 = vsel %vm1183, %v1563, %v1564
    %v1572 = vsel %vm1183, %v1562, %v1563
    %v1573 = vsel %vm1183, %v1561, %v1562
    %v1574 = vsel %vm1183, %v1560, %v1561
    %v1575 = vsel %vm1183, %v1567, %v1560
    %v1576 = vsel %vm1208, %v1575, 0.0
    %v1577 = vsel %vm1209, %v1574, 0.0
    %v1578 = vsel %vm1210, %v1573, 0.0
    %v1579 = vsel %vm1211, %v1572, 0.0
    %v1580 = vsel %vm1212, %v1571, 0.0
    %v1581 = vsel %vm1213, %v1570, 0.0
    %v1582 = vsel %vm1214, %v1569, 0.0
    %v1583 = vsel %vm1215, %v1568, 0.0
    %v1584 = vpack.c.bf16 %v1577, %v1576
    %v1585 = vpack.c.bf16 %v1579, %v1578
    %v1586 = vpack.c.bf16 %v1581, %v1580
    %v1587 = vpack.c.bf16 %v1583, %v1582
    %v1592 = vunpack.c.l.b16 %v1584
    %v1593 = vunpack.c.h.b16 %v1584
    %v1594 = vunpack.c.l.b16 %v1585
    %v1595 = vunpack.c.h.b16 %v1585
    %v1596 = vunpack.c.l.b16 %v1586
    %v1597 = vunpack.c.h.b16 %v1586
    %v1598 = vunpack.c.l.b16 %v1587
    %v1599 = vunpack.c.h.b16 %v1587
    %v1600 = vpack.c.b16 %v1592, %v1592
    %v1601 = vpack.c.b16 %v1593, %v1593
    %v1602 = vpack.c.b16 %v1594, %v1594
    %v1603 = vpack.c.b16 %v1595, %v1595
    %v1604 = vpack.c.b16 %v1596, %v1596
    %v1605 = vpack.c.b16 %v1597, %v1597
    %v1606 = vpack.c.b16 %v1598, %v1598
    %v1607 = vpack.c.b16 %v1599, %v1599
    %1616 = vst [vmem:[#allocation2] sm:$0xf] %v1600
    %1617 = vst [vmem:[#allocation2 + $0x8] sm:$0xf] %v1601
    %1618 = vst [vmem:[#allocation2 + $0x10] sm:$0xf] %v1602
    %1619 = vst [vmem:[#allocation2 + $0x18] sm:$0xf] %v1603
    %1620 = vst [vmem:[#allocation2 + $0x20] sm:$0xf] %v1604
    %1621 = vst [vmem:[#allocation2 + $0x28] sm:$0xf] %v1605
    %1622 = vst [vmem:[#allocation2 + $0x30] sm:$0xf] %v1606
    %1623 = vst [vmem:[#allocation2 + $0x38] sm:$0xf] %v1607
    %v1628 = vunpack.c.l.b16 %v1556
    %v1629 = vunpack.c.h.b16 %v1556
    %v1630 = vunpack.c.l.b16 %v1557
    %v1631 = vunpack.c.h.b16 %v1557
    %v1632 = vunpack.c.l.b16 %v1558
    %v1633 = vunpack.c.h.b16 %v1558
    %v1634 = vunpack.c.l.b16 %v1559
    %v1635 = vunpack.c.h.b16 %v1559
    %v1636 = vpack.c.b16 %v1628, %v1628
    %v1637 = vpack.c.b16 %v1629, %v1629
    %v1638 = vpack.c.b16 %v1630, %v1630
    %v1639 = vpack.c.b16 %v1631, %v1631
    %v1640 = vpack.c.b16 %v1632, %v1632
    %v1641 = vpack.c.b16 %v1633, %v1633
    %v1642 = vpack.c.b16 %v1634, %v1634
    %v1643 = vpack.c.b16 %v1635, %v1635
    %1652 = vst [vmem:[#allocation2 + $0x4] sm:$0xf] %v1636
    %1653 = vst [vmem:[#allocation2 + $0xc] sm:$0xf] %v1637
    %1654 = vst [vmem:[#allocation2 + $0x14] sm:$0xf] %v1638
    %1655 = vst [vmem:[#allocation2 + $0x1c] sm:$0xf] %v1639
    %1656 = vst [vmem:[#allocation2 + $0x24] sm:$0xf] %v1640
    %1657 = vst [vmem:[#allocation2 + $0x2c] sm:$0xf] %v1641
    %1658 = vst [vmem:[#allocation2 + $0x34] sm:$0xf] %v1642
    %1659 = vst [vmem:[#allocation2 + $0x3c] sm:$0xf] %v1643
    %v1660 = vld [vmem:[#allocation2] sm:$0xff]
    %v1661 = vld [vmem:[#allocation2 + $0x8] sm:$0xff]
    %v1662 = vld [vmem:[#allocation2 + $0x10] sm:$0xff]
    %v1663 = vld [vmem:[#allocation2 + $0x18] sm:$0xff]
    %v1664 = vld [vmem:[#allocation2 + $0x20] sm:$0xff]
    %v1665 = vld [vmem:[#allocation2 + $0x28] sm:$0xff]
    %v1666 = vld [vmem:[#allocation2 + $0x30] sm:$0xff]
    %v1667 = vld [vmem:[#allocation2 + $0x38] sm:$0xff]
    %v1668 = vld [vmem:[#allocation12] sm:$0xf]
    %v1669 = vld [vmem:[#allocation12 + $0x4] sm:$0xf]
    %v1670 = vld [vmem:[#allocation12 + $0x8] sm:$0xf]
    %v1671 = vld [vmem:[#allocation12 + $0xc] sm:$0xf]
    %v1672 = vld [vmem:[#allocation12 + $0x10] sm:$0xf]
    %v1673 = vld [vmem:[#allocation12 + $0x14] sm:$0xf]
    %v1674 = vld [vmem:[#allocation12 + $0x18] sm:$0xf]
    %v1675 = vld [vmem:[#allocation12 + $0x1c] sm:$0xf]
    %v1676 = vld [vmem:[#allocation12 + $0x20] sm:$0xf]
    %v1677 = vld [vmem:[#allocation12 + $0x24] sm:$0xf]
    %v1678 = vld [vmem:[#allocation12 + $0x28] sm:$0xf]
    %v1679 = vld [vmem:[#allocation12 + $0x2c] sm:$0xf]
    %v1680 = vld [vmem:[#allocation12 + $0x30] sm:$0xf]
    %v1681 = vld [vmem:[#allocation12 + $0x34] sm:$0xf]
    %v1682 = vld [vmem:[#allocation12 + $0x38] sm:$0xf]
    %v1683 = vld [vmem:[#allocation12 + $0x3c] sm:$0xf]
    %v1684 = vld [vmem:[#allocation12 + $0x40] sm:$0xf]
    %v1685 = vld [vmem:[#allocation12 + $0x44] sm:$0xf]
    %v1686 = vld [vmem:[#allocation12 + $0x48] sm:$0xf]
    %v1687 = vld [vmem:[#allocation12 + $0x4c] sm:$0xf]
    %v1688 = vld [vmem:[#allocation12 + $0x50] sm:$0xf]
    %v1689 = vld [vmem:[#allocation12 + $0x54] sm:$0xf]
    %v1690 = vld [vmem:[#allocation12 + $0x58] sm:$0xf]
    %v1691 = vld [vmem:[#allocation12 + $0x5c] sm:$0xf]
    %v1692 = vld [vmem:[#allocation12 + $0x60] sm:$0xf]
    %v1693 = vld [vmem:[#allocation12 + $0x64] sm:$0xf]
    %v1694 = vld [vmem:[#allocation12 + $0x68] sm:$0xf]
    %v1695 = vld [vmem:[#allocation12 + $0x6c] sm:$0xf]
    %v1696 = vld [vmem:[#allocation12 + $0x70] sm:$0xf]
    %v1697 = vld [vmem:[#allocation12 + $0x74] sm:$0xf]
    %v1698 = vld [vmem:[#allocation12 + $0x78] sm:$0xf]
    %v1699 = vld [vmem:[#allocation12 + $0x7c] sm:$0xf]
    %v1700 = vld [vmem:[%s10] sm:$0x1]
    %v1702 = vlaneseq
    %v1703 = vshrl.u32 %v1702, 7
    %v1704 = vsub.s32 0, %v1703
    %v1705 = vrot.slane %v1700, %v1704
    %v1715 = vunpack.c.l.b16 %v1660
    %v1716 = vunpack.c.h.b16 %v1660
    %v1717 = vunpack.c.l.b16 %v1661
    %v1718 = vunpack.c.h.b16 %v1661
    %v1719 = vunpack.c.l.b16 %v1662
    %v1720 = vunpack.c.h.b16 %v1662
    %v1721 = vunpack.c.l.b16 %v1663
    %v1722 = vunpack.c.h.b16 %v1663
    %v1723 = vunpack.c.l.b16 %v1664
    %v1724 = vunpack.c.h.b16 %v1664
    %v1725 = vunpack.c.l.b16 %v1665
    %v1726 = vunpack.c.h.b16 %v1665
    %v1727 = vunpack.c.l.b16 %v1666
    %v1728 = vunpack.c.h.b16 %v1666
    %v1729 = vunpack.c.l.b16 %v1667
    %v1730 = vunpack.c.h.b16 %v1667
    %v1731 = vpack.c.b16 %v1717, %v1715
    %v1732 = vpack.c.b16 %v1718, %v1716
    %v1733 = vpack.c.b16 %v1721, %v1719
    %v1734 = vpack.c.b16 %v1722, %v1720
    %v1735 = vpack.c.b16 %v1725, %v1723
    %v1736 = vpack.c.b16 %v1726, %v1724
    %v1737 = vpack.c.b16 %v1729, %v1727
    %v1738 = vpack.c.b16 %v1730, %v1728
    %v1779 = vunpack.c.l.b16 %v1668
    %v1780 = vunpack.c.l.b16 %v1669
    %v1781 = vunpack.c.l.b16 %v1670
    %v1782 = vunpack.c.l.b16 %v1671
    %v1783 = vunpack.c.l.b16 %v1672
    %v1784 = vunpack.c.l.b16 %v1673
    %v1785 = vunpack.c.l.b16 %v1674
    %v1786 = vunpack.c.l.b16 %v1675
    %v1787 = vunpack.c.l.b16 %v1676
    %v1788 = vunpack.c.l.b16 %v1677
    %v1789 = vunpack.c.l.b16 %v1678
    %v1790 = vunpack.c.l.b16 %v1679
    %v1791 = vunpack.c.l.b16 %v1680
    %v1792 = vunpack.c.l.b16 %v1681
    %v1793 = vunpack.c.l.b16 %v1682
    %v1794 = vunpack.c.l.b16 %v1683
    %v1795 = vunpack.c.l.b16 %v1684
    %v1796 = vunpack.c.l.b16 %v1685
    %v1797 = vunpack.c.l.b16 %v1686
    %v1798 = vunpack.c.l.b16 %v1687
    %v1799 = vunpack.c.l.b16 %v1688
    %v1800 = vunpack.c.l.b16 %v1689
    %v1801 = vunpack.c.l.b16 %v1690
    %v1802 = vunpack.c.l.b16 %v1691
    %v1803 = vunpack.c.l.b16 %v1692
    %v1804 = vunpack.c.l.b16 %v1693
    %v1805 = vunpack.c.l.b16 %v1694
    %v1806 = vunpack.c.l.b16 %v1695
    %v1807 = vunpack.c.l.b16 %v1696
    %v1808 = vunpack.c.l.b16 %v1697
    %v1809 = vunpack.c.l.b16 %v1698
    %v1810 = vunpack.c.l.b16 %v1699
    %v1811 = vpack.c.b16 %v1780, %v1779
    %v1812 = vpack.c.b16 %v1782, %v1781
    %v1813 = vpack.c.b16 %v1784, %v1783
    %v1814 = vpack.c.b16 %v1786, %v1785
    %v1815 = vpack.c.b16 %v1788, %v1787
    %v1816 = vpack.c.b16 %v1790, %v1789
    %v1817 = vpack.c.b16 %v1792, %v1791
    %v1818 = vpack.c.b16 %v1794, %v1793
    %v1819 = vpack.c.b16 %v1796, %v1795
    %v1820 = vpack.c.b16 %v1798, %v1797
    %v1821 = vpack.c.b16 %v1800, %v1799
    %v1822 = vpack.c.b16 %v1802, %v1801
    %v1823 = vpack.c.b16 %v1804, %v1803
    %v1824 = vpack.c.b16 %v1806, %v1805
    %v1825 = vpack.c.b16 %v1808, %v1807
    %v1826 = vpack.c.b16 %v1810, %v1809
    %1843 = vmatprep.subr.bf16.mxu0 0
    %1844 = vmatpush1.bf16.msra.mxu0 %v1818
    %1845 = vmatprep.subr.bf16.mxu0 0
    %1846 = vmatpush1.bf16.msra.mxu0 %v1817
    %1847 = vmatprep.subr.bf16.mxu0 0
    %1848 = vmatpush1.bf16.msra.mxu0 %v1816
    %1849 = vmatprep.subr.bf16.mxu0 0
    %1850 = vmatpush1.bf16.msra.mxu0 %v1815
    %1851 = vmatprep.subr.bf16.mxu0 0
    %1852 = vmatpush1.bf16.msra.mxu0 %v1814
    %1853 = vmatprep.subr.bf16.mxu0 0
    %1854 = vmatpush1.bf16.msra.mxu0 %v1813
    %1855 = vmatprep.subr.bf16.mxu0 0
    %1856 = vmatpush1.bf16.msra.mxu0 %v1812
    %1857 = vmatprep.subr.bf16.mxu0 0
    %1858 = vmatpush1.bf16.msra.mxu0 %v1811
    %1859 = vmatprep.subr.bf16.mxu0 0
    %1860 = vmatpush2.bf16.msra.mxu0 %v1826
    %1861 = vmatprep.subr.bf16.mxu0 0
    %1862 = vmatpush2.bf16.msra.mxu0 %v1825
    %1863 = vmatprep.subr.bf16.mxu0 0
    %1864 = vmatpush2.bf16.msra.mxu0 %v1824
    %1865 = vmatprep.subr.bf16.mxu0 0
    %1866 = vmatpush2.bf16.msra.mxu0 %v1823
    %1867 = vmatprep.subr.bf16.mxu0 0
    %1868 = vmatpush2.bf16.msra.mxu0 %v1822
    %1869 = vmatprep.subr.bf16.mxu0 0
    %1870 = vmatpush2.bf16.msra.mxu0 %v1821
    %1871 = vmatprep.subr.bf16.mxu0 0
    %1872 = vmatpush2.bf16.msra.mxu0 %v1820
    %1873 = vmatprep.subr.bf16.mxu0 0
    %1874 = vmatpush2.bf16.msra.mxu0 %v1819
    %1875 = vmatprep.mubr.bf16.mxu0 %v1732
    %1876 = vmatmul.mubr.bf16.gmra.mxu0 %v1731
    %v1877 = vpop.f32.mrf.mxu0
    %v1878 = vadd.f32 %v1705, %v1877
    %v1879 = vpop.f32.mrf.mxu0
    %v1880 = vpop.f32.mrf.mxu0
    %v1881 = vadd.f32 %v1705, %v1880
    %v1882 = vpop.f32.mrf.mxu0
    %1883 = vmatprep.mubr.bf16.mxu0 %v1734
    %1884 = vmatmul.mubr.bf16.gmra.mxu0 %v1733
    %v1885 = vpop.f32.mrf.mxu0
    %v1886 = vadd.f32 %v1705, %v1885
    %v1887 = vpop.f32.mrf.mxu0
    %v1888 = vpop.f32.mrf.mxu0
    %v1889 = vadd.f32 %v1705, %v1888
    %v1890 = vpop.f32.mrf.mxu0
    %1891 = vmatprep.mubr.bf16.mxu0 %v1736
    %1892 = vmatmul.mubr.bf16.gmra.mxu0 %v1735
    %v1893 = vpop.f32.mrf.mxu0
    %v1894 = vadd.f32 %v1705, %v1893
    %v1895 = vpop.f32.mrf.mxu0
    %v1896 = vpop.f32.mrf.mxu0
    %v1897 = vadd.f32 %v1705, %v1896
    %v1898 = vpop.f32.mrf.mxu0
    %1899 = vmatprep.mubr.bf16.mxu0 %v1738
    %1900 = vmatmul.mubr.bf16.gmra.mxu0 %v1737
    %v1901 = vpop.f32.mrf.mxu0
    %v1902 = vadd.f32 %v1705, %v1901
    %v1903 = vpop.f32.mrf.mxu0
    %v1904 = vpop.f32.mrf.mxu0
    %v1905 = vadd.f32 %v1705, %v1904
    %v1906 = vpop.f32.mrf.mxu0
    %1907 = vdwg.mxu0
    %v1908 = vmax.f32 %v1878, 0.0
    %v1909 = vmax.f32 %v1881, 0.0
    %v1910 = vmax.f32 %v1886, 0.0
    %v1911 = vmax.f32 %v1889, 0.0
    %v1912 = vmax.f32 %v1894, 0.0
    %v1913 = vmax.f32 %v1897, 0.0
    %v1914 = vmax.f32 %v1902, 0.0
    %v1915 = vmax.f32 %v1905, 0.0
    %v1916 = vadd.f32 %v1908, %v1163
    %v1917 = vadd.f32 %v1909, %v1164
    %v1918 = vadd.f32 %v1910, %v1165
    %v1919 = vadd.f32 %v1911, %v1166
    %v1920 = vadd.f32 %v1912, %v1167
    %v1921 = vadd.f32 %v1913, %v1168
    %v1922 = vadd.f32 %v1914, %v1169
    %v1923 = vadd.f32 %v1915, %v1170
    %v1924 = vmax.f32 %v1916, 0.0
    %v1925 = vmax.f32 %v1917, 0.0
    %v1926 = vmax.f32 %v1918, 0.0
    %v1927 = vmax.f32 %v1919, 0.0
    %v1928 = vmax.f32 %v1920, 0.0
    %v1929 = vmax.f32 %v1921, 0.0
    %v1930 = vmax.f32 %v1922, 0.0
    %v1931 = vmax.f32 %v1923, 0.0
    %v1932 = vpack.c.bf16 %v1925, %v1924
    %v1933 = vpack.c.bf16 %v1927, %v1926
    %v1934 = vpack.c.bf16 %v1929, %v1928
    %v1935 = vpack.c.bf16 %v1931, %v1930
    %v1936 = vrot.slane %v1924, 4
    %v1937 = vrot.slane %v1925, 4
    %v1938 = vrot.slane %v1926, 4
    %v1939 = vrot.slane %v1927, 4
    %v1940 = vrot.slane %v1928, 4
    %v1941 = vrot.slane %v1929, 4
    %v1942 = vrot.slane %v1930, 4
    %v1943 = vrot.slane %v1931, 4
    %vm1944 = vcmp.lt.s32.totalorder %v162, 4
    %v1945 = vsel %vm1944, %v1942, %v1943
    %v1946 = vsel %vm1944, %v1941, %v1942
    %v1947 = vsel %vm1944, %v1940, %v1941
    %v1948 = vsel %vm1944, %v1939, %v1940
    %v1949 = vsel %vm1944, %v1938, %v1939
    %v1950 = vsel %vm1944, %v1937, %v1938
    %v1951 = vsel %vm1944, %v1936, %v1937
    %v1952 = vsel %vm1944, %v1943, %v1936
    %vm1953 = vcmp.ge.s32.totalorder %v258, 4
    %vm1954 = vcmp.ge.s32.totalorder %v259, 4
    %vm1955 = vcmp.ge.s32.totalorder %v260, 4
    %vm1956 = vcmp.ge.s32.totalorder %v261, 4
    %vm1957 = vcmp.ge.s32.totalorder %v262, 4
    %vm1958 = vcmp.ge.s32.totalorder %v263, 4
    %vm1959 = vcmp.ge.s32.totalorder %v264, 4
    %vm1960 = vcmp.ge.s32.totalorder %v265, 4
    %v1961 = vsel %vm1953, 1, 0
    %v1962 = vsel %vm1954, 1, 0
    %v1963 = vsel %vm1955, 1, 0
    %v1964 = vsel %vm1956, 1, 0
    %v1965 = vsel %vm1957, 1, 0
    %v1966 = vsel %vm1958, 1, 0
    %v1967 = vsel %vm1959, 1, 0
    %v1968 = vsel %vm1960, 1, 0
    %vm1969 = vcmp.eq.s32.totalorder %v1961, 1
    %vm1970 = vcmp.eq.s32.totalorder %v1962, 1
    %vm1971 = vcmp.eq.s32.totalorder %v1963, 1
    %vm1972 = vcmp.eq.s32.totalorder %v1964, 1
    %vm1973 = vcmp.eq.s32.totalorder %v1965, 1
    %vm1974 = vcmp.eq.s32.totalorder %v1966, 1
    %vm1975 = vcmp.eq.s32.totalorder %v1967, 1
    %vm1976 = vcmp.eq.s32.totalorder %v1968, 1
    %v1977 = vsel %vm1969, %v1952, 0.0
    %v1978 = vsel %vm1970, %v1951, 0.0
    %v1979 = vsel %vm1971, %v1950, 0.0
    %v1980 = vsel %vm1972, %v1949, 0.0
    %v1981 = vsel %vm1973, %v1948, 0.0
    %v1982 = vsel %vm1974, %v1947, 0.0
    %v1983 = vsel %vm1975, %v1946, 0.0
    %v1984 = vsel %vm1976, %v1945, 0.0
    %v1985 = vpack.c.bf16 %v1978, %v1977
    %v1986 = vpack.c.bf16 %v1980, %v1979
    %v1987 = vpack.c.bf16 %v1982, %v1981
    %v1988 = vpack.c.bf16 %v1984, %v1983
    %v1993 = vunpack.c.l.b16 %v1985
    %v1994 = vunpack.c.h.b16 %v1985
    %v1995 = vunpack.c.l.b16 %v1986
    %v1996 = vunpack.c.h.b16 %v1986
    %v1997 = vunpack.c.l.b16 %v1987
    %v1998 = vunpack.c.h.b16 %v1987
    %v1999 = vunpack.c.l.b16 %v1988
    %v2000 = vunpack.c.h.b16 %v1988
    %v2001 = vpack.c.b16 %v1993, %v1993
    %v2002 = vpack.c.b16 %v1994, %v1994
    %v2003 = vpack.c.b16 %v1995, %v1995
    %v2004 = vpack.c.b16 %v1996, %v1996
    %v2005 = vpack.c.b16 %v1997, %v1997
    %v2006 = vpack.c.b16 %v1998, %v1998
    %v2007 = vpack.c.b16 %v1999, %v1999
    %v2008 = vpack.c.b16 %v2000, %v2000
    %2017 = vst [vmem:[#allocation2] sm:$0xf] %v2001
    %2018 = vst [vmem:[#allocation2 + $0x8] sm:$0xf] %v2002
    %2019 = vst [vmem:[#allocation2 + $0x10] sm:$0xf] %v2003
    %2020 = vst [vmem:[#allocation2 + $0x18] sm:$0xf] %v2004
    %2021 = vst [vmem:[#allocation2 + $0x20] sm:$0xf] %v2005
    %2022 = vst [vmem:[#allocation2 + $0x28] sm:$0xf] %v2006
    %2023 = vst [vmem:[#allocation2 + $0x30] sm:$0xf] %v2007
    %2024 = vst [vmem:[#allocation2 + $0x38] sm:$0xf] %v2008
    %v2029 = vunpack.c.l.b16 %v1932
    %v2030 = vunpack.c.h.b16 %v1932
    %v2031 = vunpack.c.l.b16 %v1933
    %v2032 = vunpack.c.h.b16 %v1933
    %v2033 = vunpack.c.l.b16 %v1934
    %v2034 = vunpack.c.h.b16 %v1934
    %v2035 = vunpack.c.l.b16 %v1935
    %v2036 = vunpack.c.h.b16 %v1935
    %v2037 = vpack.c.b16 %v2029, %v2029
    %v2038 = vpack.c.b16 %v2030, %v2030
    %v2039 = vpack.c.b16 %v2031, %v2031
    %v2040 = vpack.c.b16 %v2032, %v2032
    %v2041 = vpack.c.b16 %v2033, %v2033
    %v2042 = vpack.c.b16 %v2034, %v2034
    %v2043 = vpack.c.b16 %v2035, %v2035
    %v2044 = vpack.c.b16 %v2036, %v2036
    %2053 = vst [vmem:[#allocation2 + $0x4] sm:$0xf] %v2037
    %2054 = vst [vmem:[#allocation2 + $0xc] sm:$0xf] %v2038
    %2055 = vst [vmem:[#allocation2 + $0x14] sm:$0xf] %v2039
    %2056 = vst [vmem:[#allocation2 + $0x1c] sm:$0xf] %v2040
    %2057 = vst [vmem:[#allocation2 + $0x24] sm:$0xf] %v2041
    %2058 = vst [vmem:[#allocation2 + $0x2c] sm:$0xf] %v2042
    %2059 = vst [vmem:[#allocation2 + $0x34] sm:$0xf] %v2043
    %2060 = vst [vmem:[#allocation2 + $0x3c] sm:$0xf] %v2044
    %v2061 = vld [vmem:[#allocation2] sm:$0xff]
    %v2062 = vld [vmem:[#allocation2 + $0x8] sm:$0xff]
    %v2063 = vld [vmem:[#allocation2 + $0x10] sm:$0xff]
    %v2064 = vld [vmem:[#allocation2 + $0x18] sm:$0xff]
    %v2065 = vld [vmem:[#allocation2 + $0x20] sm:$0xff]
    %v2066 = vld [vmem:[#allocation2 + $0x28] sm:$0xff]
    %v2067 = vld [vmem:[#allocation2 + $0x30] sm:$0xff]
    %v2068 = vld [vmem:[#allocation2 + $0x38] sm:$0xff]
    %v2069 = vld [vmem:[#allocation14] sm:$0xf]
    %v2070 = vld [vmem:[#allocation14 + $0x4] sm:$0xf]
    %v2071 = vld [vmem:[#allocation14 + $0x8] sm:$0xf]
    %v2072 = vld [vmem:[#allocation14 + $0xc] sm:$0xf]
    %v2073 = vld [vmem:[#allocation14 + $0x10] sm:$0xf]
    %v2074 = vld [vmem:[#allocation14 + $0x14] sm:$0xf]
    %v2075 = vld [vmem:[#allocation14 + $0x18] sm:$0xf]
    %v2076 = vld [vmem:[#allocation14 + $0x1c] sm:$0xf]
    %v2077 = vld [vmem:[#allocation14 + $0x20] sm:$0xf]
    %v2078 = vld [vmem:[#allocation14 + $0x24] sm:$0xf]
    %v2079 = vld [vmem:[#allocation14 + $0x28] sm:$0xf]
    %v2080 = vld [vmem:[#allocation14 + $0x2c] sm:$0xf]
    %v2081 = vld [vmem:[#allocation14 + $0x30] sm:$0xf]
    %v2082 = vld [vmem:[#allocation14 + $0x34] sm:$0xf]
    %v2083 = vld [vmem:[#allocation14 + $0x38] sm:$0xf]
    %v2084 = vld [vmem:[#allocation14 + $0x3c] sm:$0xf]
    %v2085 = vld [vmem:[#allocation14 + $0x40] sm:$0xf]
    %v2086 = vld [vmem:[#allocation14 + $0x44] sm:$0xf]
    %v2087 = vld [vmem:[#allocation14 + $0x48] sm:$0xf]
    %v2088 = vld [vmem:[#allocation14 + $0x4c] sm:$0xf]
    %v2089 = vld [vmem:[#allocation14 + $0x50] sm:$0xf]
    %v2090 = vld [vmem:[#allocation14 + $0x54] sm:$0xf]
    %v2091 = vld [vmem:[#allocation14 + $0x58] sm:$0xf]
    %v2092 = vld [vmem:[#allocation14 + $0x5c] sm:$0xf]
    %v2093 = vld [vmem:[#allocation14 + $0x60] sm:$0xf]
    %v2094 = vld [vmem:[#allocation14 + $0x64] sm:$0xf]
    %v2095 = vld [vmem:[#allocation14 + $0x68] sm:$0xf]
    %v2096 = vld [vmem:[#allocation14 + $0x6c] sm:$0xf]
    %v2097 = vld [vmem:[#allocation14 + $0x70] sm:$0xf]
    %v2098 = vld [vmem:[#allocation14 + $0x74] sm:$0xf]
    %v2099 = vld [vmem:[#allocation14 + $0x78] sm:$0xf]
    %v2100 = vld [vmem:[#allocation14 + $0x7c] sm:$0xf]
    %v2101 = vld [vmem:[%s12] sm:$0x1]
    %v2103 = vlaneseq
    %v2104 = vshrl.u32 %v2103, 7
    %v2105 = vsub.s32 0, %v2104
    %v2106 = vrot.slane %v2101, %v2105
    %v2116 = vunpack.c.l.b16 %v2061
    %v2117 = vunpack.c.h.b16 %v2061
    %v2118 = vunpack.c.l.b16 %v2062
    %v2119 = vunpack.c.h.b16 %v2062
    %v2120 = vunpack.c.l.b16 %v2063
    %v2121 = vunpack.c.h.b16 %v2063
    %v2122 = vunpack.c.l.b16 %v2064
    %v2123 = vunpack.c.h.b16 %v2064
    %v2124 = vunpack.c.l.b16 %v2065
    %v2125 = vunpack.c.h.b16 %v2065
    %v2126 = vunpack.c.l.b16 %v2066
    %v2127 = vunpack.c.h.b16 %v2066
    %v2128 = vunpack.c.l.b16 %v2067
    %v2129 = vunpack.c.h.b16 %v2067
    %v2130 = vunpack.c.l.b16 %v2068
    %v2131 = vunpack.c.h.b16 %v2068
    %v2132 = vpack.c.b16 %v2118, %v2116
    %v2133 = vpack.c.b16 %v2119, %v2117
    %v2134 = vpack.c.b16 %v2122, %v2120
    %v2135 = vpack.c.b16 %v2123, %v2121
    %v2136 = vpack.c.b16 %v2126, %v2124
    %v2137 = vpack.c.b16 %v2127, %v2125
    %v2138 = vpack.c.b16 %v2130, %v2128
    %v2139 = vpack.c.b16 %v2131, %v2129
    %v2180 = vunpack.c.l.b16 %v2069
    %v2181 = vunpack.c.l.b16 %v2070
    %v2182 = vunpack.c.l.b16 %v2071
    %v2183 = vunpack.c.l.b16 %v2072
    %v2184 = vunpack.c.l.b16 %v2073
    %v2185 = vunpack.c.l.b16 %v2074
    %v2186 = vunpack.c.l.b16 %v2075
    %v2187 = vunpack.c.l.b16 %v2076
    %v2188 = vunpack.c.l.b16 %v2077
    %v2189 = vunpack.c.l.b16 %v2078
    %v2190 = vunpack.c.l.b16 %v2079
    %v2191 = vunpack.c.l.b16 %v2080
    %v2192 = vunpack.c.l.b16 %v2081
    %v2193 = vunpack.c.l.b16 %v2082
    %v2194 = vunpack.c.l.b16 %v2083
    %v2195 = vunpack.c.l.b16 %v2084
    %v2196 = vunpack.c.l.b16 %v2085
    %v2197 = vunpack.c.l.b16 %v2086
    %v2198 = vunpack.c.l.b16 %v2087
    %v2199 = vunpack.c.l.b16 %v2088
    %v2200 = vunpack.c.l.b16 %v2089
    %v2201 = vunpack.c.l.b16 %v2090
    %v2202 = vunpack.c.l.b16 %v2091
    %v2203 = vunpack.c.l.b16 %v2092
    %v2204 = vunpack.c.l.b16 %v2093
    %v2205 = vunpack.c.l.b16 %v2094
    %v2206 = vunpack.c.l.b16 %v2095
    %v2207 = vunpack.c.l.b16 %v2096
    %v2208 = vunpack.c.l.b16 %v2097
    %v2209 = vunpack.c.l.b16 %v2098
    %v2210 = vunpack.c.l.b16 %v2099
    %v2211 = vunpack.c.l.b16 %v2100
    %v2212 = vpack.c.b16 %v2181, %v2180
    %v2213 = vpack.c.b16 %v2183, %v2182
    %v2214 = vpack.c.b16 %v2185, %v2184
    %v2215 = vpack.c.b16 %v2187, %v2186
    %v2216 = vpack.c.b16 %v2189, %v2188
    %v2217 = vpack.c.b16 %v2191, %v2190
    %v2218 = vpack.c.b16 %v2193, %v2192
    %v2219 = vpack.c.b16 %v2195, %v2194
    %v2220 = vpack.c.b16 %v2197, %v2196
    %v2221 = vpack.c.b16 %v2199, %v2198
    %v2222 = vpack.c.b16 %v2201, %v2200
    %v2223 = vpack.c.b16 %v2203, %v2202
    %v2224 = vpack.c.b16 %v2205, %v2204
    %v2225 = vpack.c.b16 %v2207, %v2206
    %v2226 = vpack.c.b16 %v2209, %v2208
    %v2227 = vpack.c.b16 %v2211, %v2210
    %2244 = vmatprep.subr.bf16.mxu0 0
    %2245 = vmatpush1.bf16.msra.mxu0 %v2219
    %2246 = vmatprep.subr.bf16.mxu0 0
    %2247 = vmatpush1.bf16.msra.mxu0 %v2218
    %2248 = vmatprep.subr.bf16.mxu0 0
    %2249 = vmatpush1.bf16.msra.mxu0 %v2217
    %2250 = vmatprep.subr.bf16.mxu0 0
    %2251 = vmatpush1.bf16.msra.mxu0 %v2216
    %2252 = vmatprep.subr.bf16.mxu0 0
    %2253 = vmatpush1.bf16.msra.mxu0 %v2215
    %2254 = vmatprep.subr.bf16.mxu0 0
    %2255 = vmatpush1.bf16.msra.mxu0 %v2214
    %2256 = vmatprep.subr.bf16.mxu0 0
    %2257 = vmatpush1.bf16.msra.mxu0 %v2213
    %2258 = vmatprep.subr.bf16.mxu0 0
    %2259 = vmatpush1.bf16.msra.mxu0 %v2212
    %2260 = vmatprep.subr.bf16.mxu0 0
    %2261 = vmatpush2.bf16.msra.mxu0 %v2227
    %2262 = vmatprep.subr.bf16.mxu0 0
    %2263 = vmatpush2.bf16.msra.mxu0 %v2226
    %2264 = vmatprep.subr.bf16.mxu0 0
    %2265 = vmatpush2.bf16.msra.mxu0 %v2225
    %2266 = vmatprep.subr.bf16.mxu0 0
    %2267 = vmatpush2.bf16.msra.mxu0 %v2224
    %2268 = vmatprep.subr.bf16.mxu0 0
    %2269 = vmatpush2.bf16.msra.mxu0 %v2223
    %2270 = vmatprep.subr.bf16.mxu0 0
    %2271 = vmatpush2.bf16.msra.mxu0 %v2222
    %2272 = vmatprep.subr.bf16.mxu0 0
    %2273 = vmatpush2.bf16.msra.mxu0 %v2221
    %2274 = vmatprep.subr.bf16.mxu0 0
    %2275 = vmatpush2.bf16.msra.mxu0 %v2220
    %2276 = vmatprep.mubr.bf16.mxu0 %v2133
    %2277 = vmatmul.mubr.bf16.gmra.mxu0 %v2132
    %v2278 = vpop.f32.mrf.mxu0
    %v2279 = vadd.f32 %v2106, %v2278
    %v2280 = vpop.f32.mrf.mxu0
    %v2281 = vpop.f32.mrf.mxu0
    %v2282 = vadd.f32 %v2106, %v2281
    %v2283 = vpop.f32.mrf.mxu0
    %2284 = vmatprep.mubr.bf16.mxu0 %v2135
    %2285 = vmatmul.mubr.bf16.gmra.mxu0 %v2134
    %v2286 = vpop.f32.mrf.mxu0
    %v2287 = vadd.f32 %v2106, %v2286
    %v2288 = vpop.f32.mrf.mxu0
    %v2289 = vpop.f32.mrf.mxu0
    %v2290 = vadd.f32 %v2106, %v2289
    %v2291 = vpop.f32.mrf.mxu0
    %2292 = vmatprep.mubr.bf16.mxu0 %v2137
    %2293 = vmatmul.mubr.bf16.gmra.mxu0 %v2136
    %v2294 = vpop.f32.mrf.mxu0
    %v2295 = vadd.f32 %v2106, %v2294
    %v2296 = vpop.f32.mrf.mxu0
    %v2297 = vpop.f32.mrf.mxu0
    %v2298 = vadd.f32 %v2106, %v2297
    %v2299 = vpop.f32.mrf.mxu0
    %2300 = vmatprep.mubr.bf16.mxu0 %v2139
    %2301 = vmatmul.mubr.bf16.gmra.mxu0 %v2138
    %v2302 = vpop.f32.mrf.mxu0
    %v2303 = vadd.f32 %v2106, %v2302
    %v2304 = vpop.f32.mrf.mxu0
    %v2305 = vpop.f32.mrf.mxu0
    %v2306 = vadd.f32 %v2106, %v2305
    %v2307 = vpop.f32.mrf.mxu0
    %2308 = vdwg.mxu0
    %v2309 = vmax.f32 %v2279, 0.0
    %v2310 = vmax.f32 %v2282, 0.0
    %v2311 = vmax.f32 %v2287, 0.0
    %v2312 = vmax.f32 %v2290, 0.0
    %v2313 = vmax.f32 %v2295, 0.0
    %v2314 = vmax.f32 %v2298, 0.0
    %v2315 = vmax.f32 %v2303, 0.0
    %v2316 = vmax.f32 %v2306, 0.0
    %v2317 = vpack.c.bf16 %v2310, %v2309
    %v2318 = vpack.c.bf16 %v2312, %v2311
    %v2319 = vpack.c.bf16 %v2314, %v2313
    %v2320 = vpack.c.bf16 %v2316, %v2315
    %v2321 = vrot.slane %v2309, 4
    %v2322 = vrot.slane %v2310, 4
    %v2323 = vrot.slane %v2311, 4
    %v2324 = vrot.slane %v2312, 4
    %v2325 = vrot.slane %v2313, 4
    %v2326 = vrot.slane %v2314, 4
    %v2327 = vrot.slane %v2315, 4
    %v2328 = vrot.slane %v2316, 4
    %v2329 = vsel %vm1944, %v2327, %v2328
    %v2330 = vsel %vm1944, %v2326, %v2327
    %v2331 = vsel %vm1944, %v2325, %v2326
    %v2332 = vsel %vm1944, %v2324, %v2325
    %v2333 = vsel %vm1944, %v2323, %v2324
    %v2334 = vsel %vm1944, %v2322, %v2323
    %v2335 = vsel %vm1944, %v2321, %v2322
    %v2336 = vsel %vm1944, %v2328, %v2321
    %v2337 = vsel %vm1969, %v2336, 0.0
    %v2338 = vsel %vm1970, %v2335, 0.0
    %v2339 = vsel %vm1971, %v2334, 0.0
    %v2340 = vsel %vm1972, %v2333, 0.0
    %v2341 = vsel %vm1973, %v2332, 0.0
    %v2342 = vsel %vm1974, %v2331, 0.0
    %v2343 = vsel %vm1975, %v2330, 0.0
    %v2344 = vsel %vm1976, %v2329, 0.0
    %v2345 = vpack.c.bf16 %v2338, %v2337
    %v2346 = vpack.c.bf16 %v2340, %v2339
    %v2347 = vpack.c.bf16 %v2342, %v2341
    %v2348 = vpack.c.bf16 %v2344, %v2343
    %v2353 = vunpack.c.l.b16 %v2345
    %v2354 = vunpack.c.h.b16 %v2345
    %v2355 = vunpack.c.l.b16 %v2346
    %v2356 = vunpack.c.h.b16 %v2346
    %v2357 = vunpack.c.l.b16 %v2347
    %v2358 = vunpack.c.h.b16 %v2347
    %v2359 = vunpack.c.l.b16 %v2348
    %v2360 = vunpack.c.h.b16 %v2348
    %v2361 = vpack.c.b16 %v2353, %v2353
    %v2362 = vpack.c.b16 %v2354, %v2354
    %v2363 = vpack.c.b16 %v2355, %v2355
    %v2364 = vpack.c.b16 %v2356, %v2356
    %v2365 = vpack.c.b16 %v2357, %v2357
    %v2366 = vpack.c.b16 %v2358, %v2358
    %v2367 = vpack.c.b16 %v2359, %v2359
    %v2368 = vpack.c.b16 %v2360, %v2360
    %2377 = vst [vmem:[#allocation2] sm:$0xf] %v2361
    %2378 = vst [vmem:[#allocation2 + $0x8] sm:$0xf] %v2362
    %2379 = vst [vmem:[#allocation2 + $0x10] sm:$0xf] %v2363
    %2380 = vst [vmem:[#allocation2 + $0x18] sm:$0xf] %v2364
    %2381 = vst [vmem:[#allocation2 + $0x20] sm:$0xf] %v2365
    %2382 = vst [vmem:[#allocation2 + $0x28] sm:$0xf] %v2366
    %2383 = vst [vmem:[#allocation2 + $0x30] sm:$0xf] %v2367
    %2384 = vst [vmem:[#allocation2 + $0x38] sm:$0xf] %v2368
    %v2389 = vunpack.c.l.b16 %v2317
    %v2390 = vunpack.c.h.b16 %v2317
    %v2391 = vunpack.c.l.b16 %v2318
    %v2392 = vunpack.c.h.b16 %v2318
    %v2393 = vunpack.c.l.b16 %v2319
    %v2394 = vunpack.c.h.b16 %v2319
    %v2395 = vunpack.c.l.b16 %v2320
    %v2396 = vunpack.c.h.b16 %v2320
    %v2397 = vpack.c.b16 %v2389, %v2389
    %v2398 = vpack.c.b16 %v2390, %v2390
    %v2399 = vpack.c.b16 %v2391, %v2391
    %v2400 = vpack.c.b16 %v2392, %v2392
    %v2401 = vpack.c.b16 %v2393, %v2393
    %v2402 = vpack.c.b16 %v2394, %v2394
    %v2403 = vpack.c.b16 %v2395, %v2395
    %v2404 = vpack.c.b16 %v2396, %v2396
    %2413 = vst [vmem:[#allocation2 + $0x4] sm:$0xf] %v2397
    %2414 = vst [vmem:[#allocation2 + $0xc] sm:$0xf] %v2398
    %2415 = vst [vmem:[#allocation2 + $0x14] sm:$0xf] %v2399
    %2416 = vst [vmem:[#allocation2 + $0x1c] sm:$0xf] %v2400
    %2417 = vst [vmem:[#allocation2 + $0x24] sm:$0xf] %v2401
    %2418 = vst [vmem:[#allocation2 + $0x2c] sm:$0xf] %v2402
    %2419 = vst [vmem:[#allocation2 + $0x34] sm:$0xf] %v2403
    %2420 = vst [vmem:[#allocation2 + $0x3c] sm:$0xf] %v2404
    %v2421 = vld [vmem:[#allocation2] sm:$0xff]
    %v2422 = vld [vmem:[#allocation2 + $0x8] sm:$0xff]
    %v2423 = vld [vmem:[#allocation2 + $0x10] sm:$0xff]
    %v2424 = vld [vmem:[#allocation2 + $0x18] sm:$0xff]
    %v2425 = vld [vmem:[#allocation2 + $0x20] sm:$0xff]
    %v2426 = vld [vmem:[#allocation2 + $0x28] sm:$0xff]
    %v2427 = vld [vmem:[#allocation2 + $0x30] sm:$0xff]
    %v2428 = vld [vmem:[#allocation2 + $0x38] sm:$0xff]
    %v2429 = vld [vmem:[#allocation15] sm:$0xf]
    %v2430 = vld [vmem:[#allocation15 + $0x4] sm:$0xf]
    %v2431 = vld [vmem:[#allocation15 + $0x8] sm:$0xf]
    %v2432 = vld [vmem:[#allocation15 + $0xc] sm:$0xf]
    %v2433 = vld [vmem:[#allocation15 + $0x10] sm:$0xf]
    %v2434 = vld [vmem:[#allocation15 + $0x14] sm:$0xf]
    %v2435 = vld [vmem:[#allocation15 + $0x18] sm:$0xf]
    %v2436 = vld [vmem:[#allocation15 + $0x1c] sm:$0xf]
    %v2437 = vld [vmem:[#allocation15 + $0x20] sm:$0xf]
    %v2438 = vld [vmem:[#allocation15 + $0x24] sm:$0xf]
    %v2439 = vld [vmem:[#allocation15 + $0x28] sm:$0xf]
    %v2440 = vld [vmem:[#allocation15 + $0x2c] sm:$0xf]
    %v2441 = vld [vmem:[#allocation15 + $0x30] sm:$0xf]
    %v2442 = vld [vmem:[#allocation15 + $0x34] sm:$0xf]
    %v2443 = vld [vmem:[#allocation15 + $0x38] sm:$0xf]
    %v2444 = vld [vmem:[#allocation15 + $0x3c] sm:$0xf]
    %v2445 = vld [vmem:[#allocation15 + $0x40] sm:$0xf]
    %v2446 = vld [vmem:[#allocation15 + $0x44] sm:$0xf]
    %v2447 = vld [vmem:[#allocation15 + $0x48] sm:$0xf]
    %v2448 = vld [vmem:[#allocation15 + $0x4c] sm:$0xf]
    %v2449 = vld [vmem:[#allocation15 + $0x50] sm:$0xf]
    %v2450 = vld [vmem:[#allocation15 + $0x54] sm:$0xf]
    %v2451 = vld [vmem:[#allocation15 + $0x58] sm:$0xf]
    %v2452 = vld [vmem:[#allocation15 + $0x5c] sm:$0xf]
    %v2453 = vld [vmem:[#allocation15 + $0x60] sm:$0xf]
    %v2454 = vld [vmem:[#allocation15 + $0x64] sm:$0xf]
    %v2455 = vld [vmem:[#allocation15 + $0x68] sm:$0xf]
    %v2456 = vld [vmem:[#allocation15 + $0x6c] sm:$0xf]
    %v2457 = vld [vmem:[#allocation15 + $0x70] sm:$0xf]
    %v2458 = vld [vmem:[#allocation15 + $0x74] sm:$0xf]
    %v2459 = vld [vmem:[#allocation15 + $0x78] sm:$0xf]
    %v2460 = vld [vmem:[#allocation15 + $0x7c] sm:$0xf]
    %v2461 = vld [vmem:[%s14] sm:$0x1]
    %v2463 = vlaneseq
    %v2464 = vshrl.u32 %v2463, 7
    %v2465 = vsub.s32 0, %v2464
    %v2466 = vrot.slane %v2461, %v2465
    %v2476 = vunpack.c.l.b16 %v2421
    %v2477 = vunpack.c.h.b16 %v2421
    %v2478 = vunpack.c.l.b16 %v2422
    %v2479 = vunpack.c.h.b16 %v2422
    %v2480 = vunpack.c.l.b16 %v2423
    %v2481 = vunpack.c.h.b16 %v2423
    %v2482 = vunpack.c.l.b16 %v2424
    %v2483 = vunpack.c.h.b16 %v2424
    %v2484 = vunpack.c.l.b16 %v2425
    %v2485 = vunpack.c.h.b16 %v2425
    %v2486 = vunpack.c.l.b16 %v2426
    %v2487 = vunpack.c.h.b16 %v2426
    %v2488 = vunpack.c.l.b16 %v2427
    %v2489 = vunpack.c.h.b16 %v2427
    %v2490 = vunpack.c.l.b16 %v2428
    %v2491 = vunpack.c.h.b16 %v2428
    %v2492 = vpack.c.b16 %v2478, %v2476
    %v2493 = vpack.c.b16 %v2479, %v2477
    %v2494 = vpack.c.b16 %v2482, %v2480
    %v2495 = vpack.c.b16 %v2483, %v2481
    %v2496 = vpack.c.b16 %v2486, %v2484
    %v2497 = vpack.c.b16 %v2487, %v2485
    %v2498 = vpack.c.b16 %v2490, %v2488
    %v2499 = vpack.c.b16 %v2491, %v2489
    %v2540 = vunpack.c.l.b16 %v2429
    %v2541 = vunpack.c.l.b16 %v2430
    %v2542 = vunpack.c.l.b16 %v2431
    %v2543 = vunpack.c.l.b16 %v2432
    %v2544 = vunpack.c.l.b16 %v2433
    %v2545 = vunpack.c.l.b16 %v2434
    %v2546 = vunpack.c.l.b16 %v2435
    %v2547 = vunpack.c.l.b16 %v2436
    %v2548 = vunpack.c.l.b16 %v2437
    %v2549 = vunpack.c.l.b16 %v2438
    %v2550 = vunpack.c.l.b16 %v2439
    %v2551 = vunpack.c.l.b16 %v2440
    %v2552 = vunpack.c.l.b16 %v2441
    %v2553 = vunpack.c.l.b16 %v2442
    %v2554 = vunpack.c.l.b16 %v2443
    %v2555 = vunpack.c.l.b16 %v2444
    %v2556 = vunpack.c.l.b16 %v2445
    %v2557 = vunpack.c.l.b16 %v2446
    %v2558 = vunpack.c.l.b16 %v2447
    %v2559 = vunpack.c.l.b16 %v2448
    %v2560 = vunpack.c.l.b16 %v2449
    %v2561 = vunpack.c.l.b16 %v2450
    %v2562 = vunpack.c.l.b16 %v2451
    %v2563 = vunpack.c.l.b16 %v2452
    %v2564 = vunpack.c.l.b16 %v2453
    %v2565 = vunpack.c.l.b16 %v2454
    %v2566 = vunpack.c.l.b16 %v2455
    %v2567 = vunpack.c.l.b16 %v2456
    %v2568 = vunpack.c.l.b16 %v2457
    %v2569 = vunpack.c.l.b16 %v2458
    %v2570 = vunpack.c.l.b16 %v2459
    %v2571 = vunpack.c.l.b16 %v2460
    %v2572 = vpack.c.b16 %v2541, %v2540
    %v2573 = vpack.c.b16 %v2543, %v2542
    %v2574 = vpack.c.b16 %v2545, %v2544
    %v2575 = vpack.c.b16 %v2547, %v2546
    %v2576 = vpack.c.b16 %v2549, %v2548
    %v2577 = vpack.c.b16 %v2551, %v2550
    %v2578 = vpack.c.b16 %v2553, %v2552
    %v2579 = vpack.c.b16 %v2555, %v2554
    %v2580 = vpack.c.b16 %v2557, %v2556
    %v2581 = vpack.c.b16 %v2559, %v2558
    %v2582 = vpack.c.b16 %v2561, %v2560
    %v2583 = vpack.c.b16 %v2563, %v2562
    %v2584 = vpack.c.b16 %v2565, %v2564
    %v2585 = vpack.c.b16 %v2567, %v2566
    %v2586 = vpack.c.b16 %v2569, %v2568
    %v2587 = vpack.c.b16 %v2571, %v2570
    %2604 = vmatprep.subr.bf16.mxu0 0
    %2605 = vmatpush1.bf16.msra.mxu0 %v2579
    %2606 = vmatprep.subr.bf16.mxu0 0
    %2607 = vmatpush1.bf16.msra.mxu0 %v2578
    %2608 = vmatprep.subr.bf16.mxu0 0
    %2609 = vmatpush1.bf16.msra.mxu0 %v2577
    %2610 = vmatprep.subr.bf16.mxu0 0
    %2611 = vmatpush1.bf16.msra.mxu0 %v2576
    %2612 = vmatprep.subr.bf16.mxu0 0
    %2613 = vmatpush1.bf16.msra.mxu0 %v2575
    %2614 = vmatprep.subr.bf16.mxu0 0
    %2615 = vmatpush1.bf16.msra.mxu0 %v2574
    %2616 = vmatprep.subr.bf16.mxu0 0
    %2617 = vmatpush1.bf16.msra.mxu0 %v2573
    %2618 = vmatprep.subr.bf16.mxu0 0
    %2619 = vmatpush1.bf16.msra.mxu0 %v2572
    %2620 = vmatprep.subr.bf16.mxu0 0
    %2621 = vmatpush2.bf16.msra.mxu0 %v2587
    %2622 = vmatprep.subr.bf16.mxu0 0
    %2623 = vmatpush2.bf16.msra.mxu0 %v2586
    %2624 = vmatprep.subr.bf16.mxu0 0
    %2625 = vmatpush2.bf16.msra.mxu0 %v2585
    %2626 = vmatprep.subr.bf16.mxu0 0
    %2627 = vmatpush2.bf16.msra.mxu0 %v2584
    %2628 = vmatprep.subr.bf16.mxu0 0
    %2629 = vmatpush2.bf16.msra.mxu0 %v2583
    %2630 = vmatprep.subr.bf16.mxu0 0
    %2631 = vmatpush2.bf16.msra.mxu0 %v2582
    %2632 = vmatprep.subr.bf16.mxu0 0
    %2633 = vmatpush2.bf16.msra.mxu0 %v2581
    %2634 = vmatprep.subr.bf16.mxu0 0
    %2635 = vmatpush2.bf16.msra.mxu0 %v2580
    %2636 = vmatprep.mubr.bf16.mxu0 %v2493
    %2637 = vmatmul.mubr.bf16.gmra.mxu0 %v2492
    %v2638 = vpop.f32.mrf.mxu0
    %v2639 = vadd.f32 %v2466, %v2638
    %v2640 = vpop.f32.mrf.mxu0
    %v2641 = vpop.f32.mrf.mxu0
    %v2642 = vadd.f32 %v2466, %v2641
    %v2643 = vpop.f32.mrf.mxu0
    %2644 = vmatprep.mubr.bf16.mxu0 %v2495
    %2645 = vmatmul.mubr.bf16.gmra.mxu0 %v2494
    %v2646 = vpop.f32.mrf.mxu0
    %v2647 = vadd.f32 %v2466, %v2646
    %v2648 = vpop.f32.mrf.mxu0
    %v2649 = vpop.f32.mrf.mxu0
    %v2650 = vadd.f32 %v2466, %v2649
    %v2651 = vpop.f32.mrf.mxu0
    %2652 = vmatprep.mubr.bf16.mxu0 %v2497
    %2653 = vmatmul.mubr.bf16.gmra.mxu0 %v2496
    %v2654 = vpop.f32.mrf.mxu0
    %v2655 = vadd.f32 %v2466, %v2654
    %v2656 = vpop.f32.mrf.mxu0
    %v2657 = vpop.f32.mrf.mxu0
    %v2658 = vadd.f32 %v2466, %v2657
    %v2659 = vpop.f32.mrf.mxu0
    %2660 = vmatprep.mubr.bf16.mxu0 %v2499
    %2661 = vmatmul.mubr.bf16.gmra.mxu0 %v2498
    %v2662 = vpop.f32.mrf.mxu0
    %v2663 = vadd.f32 %v2466, %v2662
    %v2664 = vpop.f32.mrf.mxu0
    %v2665 = vpop.f32.mrf.mxu0
    %v2666 = vadd.f32 %v2466, %v2665
    %v2667 = vpop.f32.mrf.mxu0
    %2668 = vdwg.mxu0
    %v2669 = vmax.f32 %v2639, 0.0
    %v2670 = vmax.f32 %v2642, 0.0
    %v2671 = vmax.f32 %v2647, 0.0
    %v2672 = vmax.f32 %v2650, 0.0
    %v2673 = vmax.f32 %v2655, 0.0
    %v2674 = vmax.f32 %v2658, 0.0
    %v2675 = vmax.f32 %v2663, 0.0
    %v2676 = vmax.f32 %v2666, 0.0
    %v2677 = vadd.f32 %v2669, %v1924
    %v2678 = vadd.f32 %v2670, %v1925
    %v2679 = vadd.f32 %v2671, %v1926
    %v2680 = vadd.f32 %v2672, %v1927
    %v2681 = vadd.f32 %v2673, %v1928
    %v2682 = vadd.f32 %v2674, %v1929
    %v2683 = vadd.f32 %v2675, %v1930
    %v2684 = vadd.f32 %v2676, %v1931
    %v2685 = vmax.f32 %v2677, 0.0
    %v2686 = vmax.f32 %v2678, 0.0
    %v2687 = vmax.f32 %v2679, 0.0
    %v2688 = vmax.f32 %v2680, 0.0
    %v2689 = vmax.f32 %v2681, 0.0
    %v2690 = vmax.f32 %v2682, 0.0
    %v2691 = vmax.f32 %v2683, 0.0
    %v2692 = vmax.f32 %v2684, 0.0
    %2693 = vst [vmem:[#allocation17] sm:$0xff] %v2685
    %2694 = vst [vmem:[#allocation17 + $0x8] sm:$0xff] %v2686
    %2695 = vst [vmem:[#allocation17 + $0x10] sm:$0xff] %v2687
    %2696 = vst [vmem:[#allocation17 + $0x18] sm:$0xff] %v2688
    %2697 = vst [vmem:[#allocation17 + $0x20] sm:$0xff] %v2689
    %2698 = vst [vmem:[#allocation17 + $0x28] sm:$0xff] %v2690
    %2699 = vst [vmem:[#allocation17 + $0x30] sm:$0xff] %v2691
    %2700 = vst [vmem:[#allocation17 + $0x38] sm:$0xff] %v2692
    // Predicated region
    $region94: #{tpu_custom_call.1} parent=1 // pred_check
      _
    $region95: #{tpu_custom_call.1} parent=1 // pred_check_branch
      %2702 = sbr.rel (0) target = $region97
    $region96: #{tpu_custom_call.1} parent=1 // pred_region
      %s2704 = ssub.s32 1024, 1024
      %2705 = vsyncadd [#allocation5], %s2704
      %s2706 = sshll.u32 [#allocation17], 4
      %s2707 = int_to_ptr.vmem [resolvable:$true] %s2706
      %2712 = dma.vmem_to_hbm [thread:$0]  %s2707, 1024, %s15, [#allocation5], 128, 128, 8
    $region97: #{tpu_custom_call.1} parent=1 // pred_fallthru
      _
    // Predicated region
    $region98: #{tpu_custom_call.1} parent=1 // pred_check
      _
    $region99: #{tpu_custom_call.1} parent=1 // pred_check_branch
      %2714 = sbr.rel (0) target = $region101
    $region100: #{tpu_custom_call.1} parent=1 // pred_region
      %2715 = dma.done [#allocation5], 1024
    $region101: #{tpu_custom_call.1} parent=1 // pred_fallthru
      _
    %2716 = vsyncpa [#allocation4], 1
    %2717 = vsyncpa [#allocation7], 1
    %2718 = vsyncpa [#allocation10], 1
    %2719 = vsyncpa [#allocation13], 1
    %2720 = vsyncpa [#allocation16], 1
    %2721 = vsyncpa [#allocation5], 1

</llo_original>
